<compile_context>
chip_gen: v7x
topology: tpu7x:2x2x1
jax: 0.10.0
libtpu: 0.0.40
codegen_flags: <defaults>
</compile_context>

<pallas_src>
import functools

import jax
import jax.numpy as jnp
from jax.experimental import pallas as pl
from jax.experimental.pallas import tpu as pltpu


def _bin_op(a, b, i):
    # Mirrors bin_op() from the PyTorch reference (used only by the pure-JAX
    # reference below).
    if i == 0:
        return jnp.zeros_like(a)
    elif i == 1:
        return a * b
    elif i == 2:
        return a - a * b
    elif i == 3:
        return a
    elif i == 4:
        return b - a * b
    elif i == 5:
        return b
    elif i == 6:
        return a + b - 2 * a * b
    elif i == 7:
        return a + b - a * b
    elif i == 8:
        return 1 - (a + b - a * b)
    elif i == 9:
        return 1 - (a + b - 2 * a * b)
    elif i == 10:
        return 1 - b
    elif i == 11:
        return 1 - b + a * b
    elif i == 12:
        return 1 - a
    elif i == 13:
        return 1 - a + a * b
    elif i == 14:
        return 1 - a * b
    else:
        return jnp.ones_like(a)


# bin_op(a, b, i) == C[i,0] + C[i,1]*a + C[i,2]*b + C[i,3]*a*b
_GATE_COEFFS = jnp.array(
    [
        [0, 0, 0, 0],     # 0  : 0
        [0, 0, 0, 1],     # 1  : a*b
        [0, 1, 0, -1],    # 2  : a - a*b
        [0, 1, 0, 0],     # 3  : a
        [0, 0, 1, -1],    # 4  : b - a*b
        [0, 0, 1, 0],     # 5  : b
        [0, 1, 1, -2],    # 6  : a + b - 2ab
        [0, 1, 1, -1],    # 7  : a + b - ab
        [1, -1, -1, 1],   # 8  : 1 - (a + b - ab)
        [1, -1, -1, 2],   # 9  : 1 - (a + b - 2ab)
        [1, 0, -1, 0],    # 10 : 1 - b
        [1, 0, -1, 1],    # 11 : 1 - b + ab
        [1, -1, 0, 0],    # 12 : 1 - a
        [1, -1, 0, 1],    # 13 : 1 - a + ab
        [1, 0, 0, -1],    # 14 : 1 - ab
        [1, 0, 0, 0],     # 15 : 1
    ],
    dtype=jnp.float32,
)


def _round_up(n, m):
    return ((n + m - 1) // m) * m


def _pad2(x, rows, cols):
    return jnp.pad(x, ((0, rows - x.shape[0]), (0, cols - x.shape[1])))


def _difflogic_kernel(*refs, n_layers, inv_tau, matmul_dtype):
    # refs = (x, [sel_ab, coeffs] * n_layers, group_mat, out)
    x_ref = refs[0]
    group_ref = refs[1 + 2 * n_layers]
    out_ref = refs[2 + 2 * n_layers]

    h = x_ref[...]                                     # [TB, D0_pad] f32
    for l in range(n_layers):                          # unrolled at trace time
        sel_ab = refs[1 + 2 * l][...]                  # [Din_pad, 2*Dout_pad] bf16 one-hot
        cvals = refs[2 + 2 * l][...]                   # [8, Dout_pad] f32; rows 0..3 used
        dout = sel_ab.shape[1] // 2
        # Fused gather: a = h[:, idx_a], b = h[:, idx_b] via one MXU matmul
        # against the concatenated one-hot selection matrix.
        r = jnp.dot(h.astype(matmul_dtype), sel_ab.astype(matmul_dtype),
                    preferred_element_type=jnp.float32)
        a = r[:, :dout]                                # lane-aligned free slices
        b = r[:, dout:]
        c0 = cvals[0:1, :]
        ca = cvals[1:2, :]
        cb = cvals[2:3, :]
        cab = cvals[3:4, :]
        # Collapsed 16-gate mixture (affine in {1, a, b, a*b}), factored so no
        # explicit a*b temporary stays live.
        h = c0 + cb * b + a * (ca + cab * b)
    # GroupSum: one-hot grouping matmul, then a single scalar multiply by 1/tau.
    g = group_ref[...]
    out = jnp.dot(h.astype(matmul_dtype), g.astype(matmul_dtype),
                  preferred_element_type=jnp.float32)
    out_ref[...] = out * inv_tau


def make_difflogic_params(key, layers_config, output_size):
    """Deterministic parameter / wiring construction (mirrors LogicLayer.__init__)."""
    params = []
    for _, cfg in layers_config.items():
        in_dim, out_dim = cfg["in_dim"], cfg["out_dim"]
        assert out_dim * 2 >= in_dim
        key, kw, k1, k2 = jax.random.split(key, 4)
        weights = jax.random.normal(kw, (out_dim, 16), dtype=jnp.float32)
        # "random" connections: same construction as the reference.
        c = jax.random.permutation(k1, 2 * out_dim) % in_dim
        c = jax.random.permutation(k2, in_dim)[c]
        c = c.reshape(2, out_dim)
        idx_a, idx_b = c[0], c[1]
        sel_a = jax.nn.one_hot(idx_a, in_dim, dtype=jnp.float32).T  # [in_dim, out_dim]
        sel_b = jax.nn.one_hot(idx_b, in_dim, dtype=jnp.float32).T
        params.append({"weights": weights, "idx_a": idx_a, "idx_b": idx_b,
                       "sel_a": sel_a, "sel_b": sel_b})
    d_last = list(layers_config.values())[-1]["out_dim"]
    assert d_last % output_size == 0
    group_mat = jax.nn.one_hot(
        jnp.arange(d_last) // (d_last // output_size), output_size, dtype=jnp.float32)
    return params, group_mat


def _layer_probs(weights, training):
    if training:   # nn.Module default: training=True -> softmax over the 16 gates
        return jax.nn.softmax(weights, axis=-1)
    # eval path: hard one-hot argmax
    return jax.nn.one_hot(jnp.argmax(weights, axis=-1), 16, dtype=jnp.float32)


def _difflogic_forward_impl(x, params, group_mat, output_size, tau, training,
                            block_b, matmul_dtype, single_buffer_consts):
    x = jnp.asarray(x, jnp.float32)
    batch, d0 = x.shape
    n_layers = len(params)

    def const_spec(shape):
        # Constant-index blocks: fetched once; single-buffer them to halve VMEM.
        if single_buffer_consts:
            return pl.BlockSpec(shape, lambda i: (0, 0),
                                pipeline_mode=pl.Buffered(1))
        return pl.BlockSpec(shape, lambda i: (0, 0))

    # ---- JAX glue: pad features to 128 lanes, collapse gates to 4 coefficients,
    #      fuse sel_a/sel_b into one matrix, store one-hot wiring in bf16.
    d0_pad = _round_up(d0, 128)
    flat = []
    in_specs = []
    dims = [d0_pad]
    for p in params:
        din, dout = p["sel_a"].shape
        din_pad, dout_pad = _round_up(din, 128), _round_up(dout, 128)
        assert din_pad == dims[-1]
        probs = _layer_probs(p["weights"], training)                 # [dout, 16]
        coeffs = (probs @ _GATE_COEFFS).T                            # [4, dout]
        sel_ab = jnp.concatenate(
            [_pad2(p["sel_a"], din_pad, dout_pad),
             _pad2(p["sel_b"], din_pad, dout_pad)],
            axis=1).astype(jnp.bfloat16)                             # 0/1 exact in bf16
        flat += [
            sel_ab,
            _pad2(jnp.asarray(coeffs, jnp.float32), 8, dout_pad),
        ]
        in_specs += [
            const_spec((din_pad, 2 * dout_pad)),
            const_spec((8, dout_pad)),
        ]
        dims.append(dout_pad)

    d_last = group_mat.shape[0]
    d_last_pad = _round_up(d_last, 128)
    out_pad = _round_up(output_size, 128)
    assert d_last_pad == dims[-1]
    group_pad = _pad2(group_mat, d_last_pad, out_pad).astype(jnp.bfloat16)

    # ---- batch tiling: TB multiple of 8 sublanes; >=256 rows fills the
    #      v6e/v7x MXU when batch allows; nb >= 2 keeps both v7x cores busy.
    if batch >= 2 * block_b:
        tb = block_b
    elif batch > 8:
        tb = _round_up((batch + 1) // 2, 8)
    else:
        tb = _round_up(max(batch, 1), 8)
    b_pad = _round_up(batch, tb)
    nb = b_pad // tb
    x_p = jnp.pad(x, ((0, b_pad - batch), (0, d0_pad - d0)))

    in_specs = [pl.BlockSpec((tb, d0_pad), lambda i: (i, 0))] + in_specs
    in_specs.append(const_spec((d_last_pad, out_pad)))

    # ---- explicit scoped-VMEM budget from the resident block footprint.
    nbuf_const = 1 if single_buffer_consts else 2
    const_bytes = sum(int(a.size) * a.dtype.itemsize for a in flat)
    const_bytes += int(group_pad.size) * group_pad.dtype.itemsize
    act_bytes = 2 * tb * (d0_pad + out_pad) * 4        # double-buffered x / out tiles
    vmem_limit = int(min(max((const_bytes * nbuf_const + act_bytes) * 12 // 10
                             + (4 << 20), 32 << 20), 128 << 20))

    kernel = functools.partial(_difflogic_kernel, n_layers=n_layers,
                               inv_tau=1.0 / float(tau),
                               matmul_dtype=matmul_dtype)
    out_padded = pl.pallas_call(
        kernel,
        out_shape=jax.ShapeDtypeStruct((b_pad, out_pad), jnp.float32),
        grid_spec=pltpu.PrefetchScalarGridSpec(
            num_scalar_prefetch=0,
            grid=(nb,),
            in_specs=in_specs,
            out_specs=pl.BlockSpec((tb, out_pad), lambda i: (i, 0)),
        ),
        compiler_params=pltpu.CompilerParams(
            dimension_semantics=("parallel",),
            vmem_limit_bytes=vmem_limit),
    )(x_p, *flat, group_pad)

    return out_padded[:batch, :output_size]


def difflogic_forward(x, params, group_mat, output_size, tau, training=True,
                      block_b=512, matmul_dtype=jnp.float32):
    try:
        return _difflogic_forward_impl(x, params, group_mat, output_size, tau,
                                       training, block_b, matmul_dtype,
                                       single_buffer_consts=True)
    except Exception:
        # TODO(synk): pl.Buffered(1) not accepted by this jax build; fall back to
        # default double-buffered constant blocks (same numerics, 2x wiring VMEM).
        return _difflogic_forward_impl(x, params, group_mat, output_size, tau,
                                       training, block_b, matmul_dtype,
                                       single_buffer_consts=False)


def difflogic_reference(x, params, output_size, tau, training=True):
    """Pure-JAX mirror of the PyTorch forward, for correctness checking."""
    h = jnp.asarray(x, jnp.float32)
    for p in params:
        a = h[..., p["idx_a"]]
        b = h[..., p["idx_b"]]
        probs = _layer_probs(p["weights"], training)  # [D_out, 16]
        r = jnp.zeros_like(a)
        for i in range(16):
            r = r + probs[..., i] * _bin_op(a, b, i)
        h = r
    d = h.shape[-1]
    return h.reshape(*h.shape[:-1], output_size, d // output_size).sum(-1) / tau


if __name__ == "__main__":
    key = jax.random.PRNGKey(0)
    layers_config = {
        "layer1": {"in_dim": 32, "out_dim": 64, "connections": "random", "grad_factor": 1.0},
        "layer2": {"in_dim": 64, "out_dim": 64, "connections": "random", "grad_factor": 1.0},
        "layer3": {"in_dim": 64, "out_dim": 60, "connections": "random", "grad_factor": 1.0},
    }
    output_size = 10
    tau = 30.0

    key, kx, kp = jax.random.split(key, 3)
    x = jax.random.uniform(kx, (8, 32), dtype=jnp.float32)
    params, group_mat = make_difflogic_params(kp, layers_config, output_size)
    ref = difflogic_reference(x, params, output_size, tau, training=True)

    # f32 training (softmax) path -- exact vs pure-JAX reference.
    out = difflogic_forward(x, params, group_mat, output_size, tau, training=True)
    jax.block_until_ready(out)
    assert out.shape == (8, output_size), out.shape
    assert jnp.allclose(out, ref, rtol=1e-5, atol=1e-5), float(jnp.max(jnp.abs(out - ref)))

    # f32 eval (hard argmax) path.
    out_eval = difflogic_forward(x, params, group_mat, output_size, tau, training=False)
    ref_eval = difflogic_reference(x, params, output_size, tau, training=False)
    jax.block_until_ready(out_eval)
    assert jnp.allclose(out_eval, ref_eval, rtol=1e-5, atol=1e-5)

    # Optional bf16-activation fast path (MXU-native on v6e/v7x) -- loose tolerance.
    out_bf16 = difflogic_forward(x, params, group_mat, output_size, tau,
                                 training=True, matmul_dtype=jnp.bfloat16)
    jax.block_until_ready(out_bf16)
    assert jnp.allclose(out_bf16, ref, rtol=5e-2, atol=5e-2), \
        float(jnp.max(jnp.abs(out_bf16 - ref)))

    print("KERNEL_OK")
</pallas_src>

<mosaic_0001>
module attributes {stable_mosaic.version = 11 : i64} {
  func.func @_difflogic_kernel(%arg0: i32, %arg1: memref<8x128xf32, #tpu.memory_space<vmem>>, %arg2: memref<128x256xbf16, #tpu.memory_space<vmem>>, %arg3: memref<8x128xf32, #tpu.memory_space<vmem>>, %arg4: memref<128x256xbf16, #tpu.memory_space<vmem>>, %arg5: memref<8x128xf32, #tpu.memory_space<vmem>>, %arg6: memref<128x256xbf16, #tpu.memory_space<vmem>>, %arg7: memref<8x128xf32, #tpu.memory_space<vmem>>, %arg8: memref<128x128xbf16, #tpu.memory_space<vmem>>, %arg9: memref<8x128xf32, #tpu.memory_space<vmem>>) attributes {dimension_semantics = [#tpu.dimension_semantics<parallel>], iteration_bounds = array<i64: 1>, scalar_prefetch = 0 : i64, scratch_operands = 0 : i64, tpu.core_type = #tpu.core_type<tc>, window_params = [{transform_indices = @transform_0, window_bounds = array<i64: 8, 128>}, {pipeline_mode = #tpu.pipeline_mode<synchronous>, transform_indices = @transform_1, window_bounds = array<i64: 128, 256>}, {pipeline_mode = #tpu.pipeline_mode<synchronous>, transform_indices = @transform_2, window_bounds = array<i64: 8, 128>}, {pipeline_mode = #tpu.pipeline_mode<synchronous>, transform_indices = @transform_3, window_bounds = array<i64: 128, 256>}, {pipeline_mode = #tpu.pipeline_mode<synchronous>, transform_indices = @transform_4, window_bounds = array<i64: 8, 128>}, {pipeline_mode = #tpu.pipeline_mode<synchronous>, transform_indices = @transform_5, window_bounds = array<i64: 128, 256>}, {pipeline_mode = #tpu.pipeline_mode<synchronous>, transform_indices = @transform_6, window_bounds = array<i64: 8, 128>}, {pipeline_mode = #tpu.pipeline_mode<synchronous>, transform_indices = @transform_7, window_bounds = array<i64: 128, 128>}, {transform_indices = @transform_8, window_bounds = array<i64: 8, 128>}]} {
    %c0 = arith.constant 0 : index
    %c0_0 = arith.constant 0 : index
    %0 = vector.load %arg1[%c0, %c0_0] : memref<8x128xf32, #tpu.memory_space<vmem>>, vector<8x128xf32>
    %c0_1 = arith.constant 0 : index
    %c0_2 = arith.constant 0 : index
    %1 = vector.load %arg2[%c0_1, %c0_2] : memref<128x256xbf16, #tpu.memory_space<vmem>>, vector<128x256xbf16>
    %c0_3 = arith.constant 0 : index
    %c0_4 = arith.constant 0 : index
    %2 = vector.load %arg3[%c0_3, %c0_4] : memref<8x128xf32, #tpu.memory_space<vmem>>, vector<8x128xf32>
    %3 = arith.extf %1 : vector<128x256xbf16> to vector<128x256xf32>
    %cst = arith.constant dense<0.000000e+00> : vector<8x256xf32>
    %4 = tpu.matmul %0, %3, %cst {dimension_numbers = #tpu.dot_dimension_numbers<[1], [0], [0], [1], [0, 0, 1, 1], [], []>} : vector<8x128xf32>, vector<128x256xf32>, vector<8x256xf32> -> vector<8x256xf32>
    %5 = vector.extract_strided_slice %4 {offsets = [0, 0], sizes = [8, 128], strides = [1, 1]} : vector<8x256xf32> to vector<8x128xf32>
    %6 = vector.extract_strided_slice %4 {offsets = [0, 128], sizes = [8, 128], strides = [1, 1]} : vector<8x256xf32> to vector<8x128xf32>
    %7 = vector.extract_strided_slice %2 {offsets = [0, 0], sizes = [1, 128], strides = [1, 1]} : vector<8x128xf32> to vector<1x128xf32>
    %8 = vector.extract_strided_slice %2 {offsets = [1, 0], sizes = [1, 128], strides = [1, 1]} : vector<8x128xf32> to vector<1x128xf32>
    %9 = vector.extract_strided_slice %2 {offsets = [2, 0], sizes = [1, 128], strides = [1, 1]} : vector<8x128xf32> to vector<1x128xf32>
    %10 = vector.extract_strided_slice %2 {offsets = [3, 0], sizes = [1, 128], strides = [1, 1]} : vector<8x128xf32> to vector<1x128xf32>
    %11 = vector.broadcast %9 : vector<1x128xf32> to vector<8x128xf32>
    %12 = arith.mulf %11, %6 : vector<8x128xf32>
    %13 = vector.broadcast %7 : vector<1x128xf32> to vector<8x128xf32>
    %14 = arith.addf %13, %12 : vector<8x128xf32>
    %15 = vector.broadcast %10 : vector<1x128xf32> to vector<8x128xf32>
    %16 = arith.mulf %15, %6 : vector<8x128xf32>
    %17 = vector.broadcast %8 : vector<1x128xf32> to vector<8x128xf32>
    %18 = arith.addf %17, %16 : vector<8x128xf32>
    %19 = arith.mulf %5, %18 : vector<8x128xf32>
    %20 = arith.addf %14, %19 : vector<8x128xf32>
    %c0_5 = arith.constant 0 : index
    %c0_6 = arith.constant 0 : index
    %21 = vector.load %arg4[%c0_5, %c0_6] : memref<128x256xbf16, #tpu.memory_space<vmem>>, vector<128x256xbf16>
    %c0_7 = arith.constant 0 : index
    %c0_8 = arith.constant 0 : index
    %22 = vector.load %arg5[%c0_7, %c0_8] : memref<8x128xf32, #tpu.memory_space<vmem>>, vector<8x128xf32>
    %23 = arith.extf %21 : vector<128x256xbf16> to vector<128x256xf32>
    %cst_9 = arith.constant dense<0.000000e+00> : vector<8x256xf32>
    %24 = tpu.matmul %20, %23, %cst_9 {dimension_numbers = #tpu.dot_dimension_numbers<[1], [0], [0], [1], [0, 0, 1, 1], [], []>} : vector<8x128xf32>, vector<128x256xf32>, vector<8x256xf32> -> vector<8x256xf32>
    %25 = vector.extract_strided_slice %24 {offsets = [0, 0], sizes = [8, 128], strides = [1, 1]} : vector<8x256xf32> to vector<8x128xf32>
    %26 = vector.extract_strided_slice %24 {offsets = [0, 128], sizes = [8, 128], strides = [1, 1]} : vector<8x256xf32> to vector<8x128xf32>
    %27 = vector.extract_strided_slice %22 {offsets = [0, 0], sizes = [1, 128], strides = [1, 1]} : vector<8x128xf32> to vector<1x128xf32>
    %28 = vector.extract_strided_slice %22 {offsets = [1, 0], sizes = [1, 128], strides = [1, 1]} : vector<8x128xf32> to vector<1x128xf32>
    %29 = vector.extract_strided_slice %22 {offsets = [2, 0], sizes = [1, 128], strides = [1, 1]} : vector<8x128xf32> to vector<1x128xf32>
    %30 = vector.extract_strided_slice %22 {offsets = [3, 0], sizes = [1, 128], strides = [1, 1]} : vector<8x128xf32> to vector<1x128xf32>
    %31 = vector.broadcast %29 : vector<1x128xf32> to vector<8x128xf32>
    %32 = arith.mulf %31, %26 : vector<8x128xf32>
    %33 = vector.broadcast %27 : vector<1x128xf32> to vector<8x128xf32>
    %34 = arith.addf %33, %32 : vector<8x128xf32>
    %35 = vector.broadcast %30 : vector<1x128xf32> to vector<8x128xf32>
    %36 = arith.mulf %35, %26 : vector<8x128xf32>
    %37 = vector.broadcast %28 : vector<1x128xf32> to vector<8x128xf32>
    %38 = arith.addf %37, %36 : vector<8x128xf32>
    %39 = arith.mulf %25, %38 : vector<8x128xf32>
    %40 = arith.addf %34, %39 : vector<8x128xf32>
    %c0_10 = arith.constant 0 : index
    %c0_11 = arith.constant 0 : index
    %41 = vector.load %arg6[%c0_10, %c0_11] : memref<128x256xbf16, #tpu.memory_space<vmem>>, vector<128x256xbf16>
    %c0_12 = arith.constant 0 : index
    %c0_13 = arith.constant 0 : index
    %42 = vector.load %arg7[%c0_12, %c0_13] : memref<8x128xf32, #tpu.memory_space<vmem>>, vector<8x128xf32>
    %43 = arith.extf %41 : vector<128x256xbf16> to vector<128x256xf32>
    %cst_14 = arith.constant dense<0.000000e+00> : vector<8x256xf32>
    %44 = tpu.matmul %40, %43, %cst_14 {dimension_numbers = #tpu.dot_dimension_numbers<[1], [0], [0], [1], [0, 0, 1, 1], [], []>} : vector<8x128xf32>, vector<128x256xf32>, vector<8x256xf32> -> vector<8x256xf32>
    %45 = vector.extract_strided_slice %44 {offsets = [0, 0], sizes = [8, 128], strides = [1, 1]} : vector<8x256xf32> to vector<8x128xf32>
    %46 = vector.extract_strided_slice %44 {offsets = [0, 128], sizes = [8, 128], strides = [1, 1]} : vector<8x256xf32> to vector<8x128xf32>
    %47 = vector.extract_strided_slice %42 {offsets = [0, 0], sizes = [1, 128], strides = [1, 1]} : vector<8x128xf32> to vector<1x128xf32>
    %48 = vector.extract_strided_slice %42 {offsets = [1, 0], sizes = [1, 128], strides = [1, 1]} : vector<8x128xf32> to vector<1x128xf32>
    %49 = vector.extract_strided_slice %42 {offsets = [2, 0], sizes = [1, 128], strides = [1, 1]} : vector<8x128xf32> to vector<1x128xf32>
    %50 = vector.extract_strided_slice %42 {offsets = [3, 0], sizes = [1, 128], strides = [1, 1]} : vector<8x128xf32> to vector<1x128xf32>
    %51 = vector.broadcast %49 : vector<1x128xf32> to vector<8x128xf32>
    %52 = arith.mulf %51, %46 : vector<8x128xf32>
    %53 = vector.broadcast %47 : vector<1x128xf32> to vector<8x128xf32>
    %54 = arith.addf %53, %52 : vector<8x128xf32>
    %55 = vector.broadcast %50 : vector<1x128xf32> to vector<8x128xf32>
    %56 = arith.mulf %55, %46 : vector<8x128xf32>
    %57 = vector.broadcast %48 : vector<1x128xf32> to vector<8x128xf32>
    %58 = arith.addf %57, %56 : vector<8x128xf32>
    %59 = arith.mulf %45, %58 : vector<8x128xf32>
    %60 = arith.addf %54, %59 : vector<8x128xf32>
    %c0_15 = arith.constant 0 : index
    %c0_16 = arith.constant 0 : index
    %61 = vector.load %arg8[%c0_15, %c0_16] : memref<128x128xbf16, #tpu.memory_space<vmem>>, vector<128x128xbf16>
    %62 = arith.extf %61 : vector<128x128xbf16> to vector<128x128xf32>
    %cst_17 = arith.constant dense<0.000000e+00> : vector<8x128xf32>
    %63 = tpu.matmul %60, %62, %cst_17 {dimension_numbers = #tpu.dot_dimension_numbers<[1], [0], [0], [1], [0, 0, 1, 1], [], []>} : vector<8x128xf32>, vector<128x128xf32>, vector<8x128xf32> -> vector<8x128xf32>
    %cst_18 = arith.constant 0.0333333351 : f32
    %64 = vector.broadcast %cst_18 : f32 to vector<8x128xf32>
    %65 = arith.mulf %63, %64 : vector<8x128xf32>
    %c0_19 = arith.constant 0 : index
    %c0_20 = arith.constant 0 : index
    %66 = vector.load %arg9[%c0_19, %c0_20] : memref<8x128xf32, #tpu.memory_space<vmem>>, vector<8x128xf32>
    tpu.vector_store %arg9[%c0_19, %c0_20], %65 {strides = array<i32>} : memref<8x128xf32, #tpu.memory_space<vmem>>, vector<8x128xf32>,
    return
  }
  func.func @transform_0(%arg0: i32) -> (i32, i32) {
    %c0_i32 = arith.constant 0 : i32
    %c0_i32_0 = arith.constant 0 : i32
    return %arg0, %c0_i32 : i32, i32
  }
  func.func @transform_1(%arg0: i32) -> (i32, i32) {
    %c0_i32 = arith.constant 0 : i32
    %c0_i32_0 = arith.constant 0 : i32
    %c0_i32_1 = arith.constant 0 : i32
    return %c0_i32, %c0_i32_0 : i32, i32
  }
  func.func @transform_2(%arg0: i32) -> (i32, i32) {
    %c0_i32 = arith.constant 0 : i32
    %c0_i32_0 = arith.constant 0 : i32
    %c0_i32_1 = arith.constant 0 : i32
    return %c0_i32, %c0_i32_0 : i32, i32
  }
  func.func @transform_3(%arg0: i32) -> (i32, i32) {
    %c0_i32 = arith.constant 0 : i32
    %c0_i32_0 = arith.constant 0 : i32
    %c0_i32_1 = arith.constant 0 : i32
    return %c0_i32, %c0_i32_0 : i32, i32
  }
  func.func @transform_4(%arg0: i32) -> (i32, i32) {
    %c0_i32 = arith.constant 0 : i32
    %c0_i32_0 = arith.constant 0 : i32
    %c0_i32_1 = arith.constant 0 : i32
    return %c0_i32, %c0_i32_0 : i32, i32
  }
  func.func @transform_5(%arg0: i32) -> (i32, i32) {
    %c0_i32 = arith.constant 0 : i32
    %c0_i32_0 = arith.constant 0 : i32
    %c0_i32_1 = arith.constant 0 : i32
    return %c0_i32, %c0_i32_0 : i32, i32
  }
  func.func @transform_6(%arg0: i32) -> (i32, i32) {
    %c0_i32 = arith.constant 0 : i32
    %c0_i32_0 = arith.constant 0 : i32
    %c0_i32_1 = arith.constant 0 : i32
    return %c0_i32, %c0_i32_0 : i32, i32
  }
  func.func @transform_7(%arg0: i32) -> (i32, i32) {
    %c0_i32 = arith.constant 0 : i32
    %c0_i32_0 = arith.constant 0 : i32
    %c0_i32_1 = arith.constant 0 : i32
    return %c0_i32, %c0_i32_0 : i32, i32
  }
  func.func @transform_8(%arg0: i32) -> (i32, i32) {
    %c0_i32 = arith.constant 0 : i32
    %c0_i32_0 = arith.constant 0 : i32
    return %arg0, %c0_i32 : i32, i32
  }
}

module attributes {stable_mosaic.version = 11 : i64} {
  func.func @_difflogic_kernel(%arg0: i32, %arg1: memref<8x128xf32, #tpu.memory_space<vmem>>, %arg2: memref<128x256xbf16, #tpu.memory_space<vmem>>, %arg3: memref<8x128xf32, #tpu.memory_space<vmem>>, %arg4: memref<128x256xbf16, #tpu.memory_space<vmem>>, %arg5: memref<8x128xf32, #tpu.memory_space<vmem>>, %arg6: memref<128x256xbf16, #tpu.memory_space<vmem>>, %arg7: memref<8x128xf32, #tpu.memory_space<vmem>>, %arg8: memref<128x128xbf16, #tpu.memory_space<vmem>>, %arg9: memref<8x128xf32, #tpu.memory_space<vmem>>) attributes {dimension_semantics = [#tpu.dimension_semantics<parallel>], iteration_bounds = array<i64: 1>, scalar_prefetch = 0 : i64, scratch_operands = 0 : i64, tpu.core_type = #tpu.core_type<tc>, window_params = [{transform_indices = @transform_0, window_bounds = array<i64: 8, 128>}, {pipeline_mode = #tpu.pipeline_mode<synchronous>, transform_indices = @transform_1, window_bounds = array<i64: 128, 256>}, {pipeline_mode = #tpu.pipeline_mode<synchronous>, transform_indices = @transform_2, window_bounds = array<i64: 8, 128>}, {pipeline_mode = #tpu.pipeline_mode<synchronous>, transform_indices = @transform_3, window_bounds = array<i64: 128, 256>}, {pipeline_mode = #tpu.pipeline_mode<synchronous>, transform_indices = @transform_4, window_bounds = array<i64: 8, 128>}, {pipeline_mode = #tpu.pipeline_mode<synchronous>, transform_indices = @transform_5, window_bounds = array<i64: 128, 256>}, {pipeline_mode = #tpu.pipeline_mode<synchronous>, transform_indices = @transform_6, window_bounds = array<i64: 8, 128>}, {pipeline_mode = #tpu.pipeline_mode<synchronous>, transform_indices = @transform_7, window_bounds = array<i64: 128, 128>}, {transform_indices = @transform_8, window_bounds = array<i64: 8, 128>}]} {
    %c0 = arith.constant 0 : index
    %c0_0 = arith.constant 0 : index
    %0 = vector.load %arg1[%c0, %c0_0] : memref<8x128xf32, #tpu.memory_space<vmem>>, vector<8x128xf32>
    %c0_1 = arith.constant 0 : index
    %c0_2 = arith.constant 0 : index
    %1 = vector.load %arg2[%c0_1, %c0_2] : memref<128x256xbf16, #tpu.memory_space<vmem>>, vector<128x256xbf16>
    %c0_3 = arith.constant 0 : index
    %c0_4 = arith.constant 0 : index
    %2 = vector.load %arg3[%c0_3, %c0_4] : memref<8x128xf32, #tpu.memory_space<vmem>>, vector<8x128xf32>
    %3 = arith.extf %1 : vector<128x256xbf16> to vector<128x256xf32>
    %cst = arith.constant dense<0.000000e+00> : vector<8x256xf32>
    %4 = tpu.matmul %0, %3, %cst {dimension_numbers = #tpu.dot_dimension_numbers<[1], [0], [0], [1], [0, 0, 1, 1], [], []>} : vector<8x128xf32>, vector<128x256xf32>, vector<8x256xf32> -> vector<8x256xf32>
    %5 = vector.extract_strided_slice %4 {offsets = [0, 0], sizes = [8, 128], strides = [1, 1]} : vector<8x256xf32> to vector<8x128xf32>
    %6 = vector.extract_strided_slice %4 {offsets = [0, 128], sizes = [8, 128], strides = [1, 1]} : vector<8x256xf32> to vector<8x128xf32>
    %7 = vector.extract_strided_slice %2 {offsets = [0, 0], sizes = [1, 128], strides = [1, 1]} : vector<8x128xf32> to vector<1x128xf32>
    %8 = vector.extract_strided_slice %2 {offsets = [1, 0], sizes = [1, 128], strides = [1, 1]} : vector<8x128xf32> to vector<1x128xf32>
    %9 = vector.extract_strided_slice %2 {offsets = [2, 0], sizes = [1, 128], strides = [1, 1]} : vector<8x128xf32> to vector<1x128xf32>
    %10 = vector.extract_strided_slice %2 {offsets = [3, 0], sizes = [1, 128], strides = [1, 1]} : vector<8x128xf32> to vector<1x128xf32>
    %11 = vector.broadcast %9 : vector<1x128xf32> to vector<8x128xf32>
    %12 = arith.mulf %11, %6 : vector<8x128xf32>
    %13 = vector.broadcast %7 : vector<1x128xf32> to vector<8x128xf32>
    %14 = arith.addf %13, %12 : vector<8x128xf32>
    %15 = vector.broadcast %10 : vector<1x128xf32> to vector<8x128xf32>
    %16 = arith.mulf %15, %6 : vector<8x128xf32>
    %17 = vector.broadcast %8 : vector<1x128xf32> to vector<8x128xf32>
    %18 = arith.addf %17, %16 : vector<8x128xf32>
    %19 = arith.mulf %5, %18 : vector<8x128xf32>
    %20 = arith.addf %14, %19 : vector<8x128xf32>
    %c0_5 = arith.constant 0 : index
    %c0_6 = arith.constant 0 : index
    %21 = vector.load %arg4[%c0_5, %c0_6] : memref<128x256xbf16, #tpu.memory_space<vmem>>, vector<128x256xbf16>
    %c0_7 = arith.constant 0 : index
    %c0_8 = arith.constant 0 : index
    %22 = vector.load %arg5[%c0_7, %c0_8] : memref<8x128xf32, #tpu.memory_space<vmem>>, vector<8x128xf32>
    %23 = arith.extf %21 : vector<128x256xbf16> to vector<128x256xf32>
    %cst_9 = arith.constant dense<0.000000e+00> : vector<8x256xf32>
    %24 = tpu.matmul %20, %23, %cst_9 {dimension_numbers = #tpu.dot_dimension_numbers<[1], [0], [0], [1], [0, 0, 1, 1], [], []>} : vector<8x128xf32>, vector<128x256xf32>, vector<8x256xf32> -> vector<8x256xf32>
    %25 = vector.extract_strided_slice %24 {offsets = [0, 0], sizes = [8, 128], strides = [1, 1]} : vector<8x256xf32> to vector<8x128xf32>
    %26 = vector.extract_strided_slice %24 {offsets = [0, 128], sizes = [8, 128], strides = [1, 1]} : vector<8x256xf32> to vector<8x128xf32>
    %27 = vector.extract_strided_slice %22 {offsets = [0, 0], sizes = [1, 128], strides = [1, 1]} : vector<8x128xf32> to vector<1x128xf32>
    %28 = vector.extract_strided_slice %22 {offsets = [1, 0], sizes = [1, 128], strides = [1, 1]} : vector<8x128xf32> to vector<1x128xf32>
    %29 = vector.extract_strided_slice %22 {offsets = [2, 0], sizes = [1, 128], strides = [1, 1]} : vector<8x128xf32> to vector<1x128xf32>
    %30 = vector.extract_strided_slice %22 {offsets = [3, 0], sizes = [1, 128], strides = [1, 1]} : vector<8x128xf32> to vector<1x128xf32>
    %31 = vector.broadcast %29 : vector<1x128xf32> to vector<8x128xf32>
    %32 = arith.mulf %31, %26 : vector<8x128xf32>
    %33 = vector.broadcast %27 : vector<1x128xf32> to vector<8x128xf32>
    %34 = arith.addf %33, %32 : vector<8x128xf32>
    %35 = vector.broadcast %30 : vector<1x128xf32> to vector<8x128xf32>
    %36 = arith.mulf %35, %26 : vector<8x128xf32>
    %37 = vector.broadcast %28 : vector<1x128xf32> to vector<8x128xf32>
    %38 = arith.addf %37, %36 : vector<8x128xf32>
    %39 = arith.mulf %25, %38 : vector<8x128xf32>
    %40 = arith.addf %34, %39 : vector<8x128xf32>
    %c0_10 = arith.constant 0 : index
    %c0_11 = arith.constant 0 : index
    %41 = vector.load %arg6[%c0_10, %c0_11] : memref<128x256xbf16, #tpu.memory_space<vmem>>, vector<128x256xbf16>
    %c0_12 = arith.constant 0 : index
    %c0_13 = arith.constant 0 : index
    %42 = vector.load %arg7[%c0_12, %c0_13] : memref<8x128xf32, #tpu.memory_space<vmem>>, vector<8x128xf32>
    %43 = arith.extf %41 : vector<128x256xbf16> to vector<128x256xf32>
    %cst_14 = arith.constant dense<0.000000e+00> : vector<8x256xf32>
    %44 = tpu.matmul %40, %43, %cst_14 {dimension_numbers = #tpu.dot_dimension_numbers<[1], [0], [0], [1], [0, 0, 1, 1], [], []>} : vector<8x128xf32>, vector<128x256xf32>, vector<8x256xf32> -> vector<8x256xf32>
    %45 = vector.extract_strided_slice %44 {offsets = [0, 0], sizes = [8, 128], strides = [1, 1]} : vector<8x256xf32> to vector<8x128xf32>
    %46 = vector.extract_strided_slice %44 {offsets = [0, 128], sizes = [8, 128], strides = [1, 1]} : vector<8x256xf32> to vector<8x128xf32>
    %47 = vector.extract_strided_slice %42 {offsets = [0, 0], sizes = [1, 128], strides = [1, 1]} : vector<8x128xf32> to vector<1x128xf32>
    %48 = vector.extract_strided_slice %42 {offsets = [1, 0], sizes = [1, 128], strides = [1, 1]} : vector<8x128xf32> to vector<1x128xf32>
    %49 = vector.extract_strided_slice %42 {offsets = [2, 0], sizes = [1, 128], strides = [1, 1]} : vector<8x128xf32> to vector<1x128xf32>
    %50 = vector.extract_strided_slice %42 {offsets = [3, 0], sizes = [1, 128], strides = [1, 1]} : vector<8x128xf32> to vector<1x128xf32>
    %51 = vector.broadcast %49 : vector<1x128xf32> to vector<8x128xf32>
    %52 = arith.mulf %51, %46 : vector<8x128xf32>
    %53 = vector.broadcast %47 : vector<1x128xf32> to vector<8x128xf32>
    %54 = arith.addf %53, %52 : vector<8x128xf32>
    %55 = vector.broadcast %50 : vector<1x128xf32> to vector<8x128xf32>
    %56 = arith.mulf %55, %46 : vector<8x128xf32>
    %57 = vector.broadcast %48 : vector<1x128xf32> to vector<8x128xf32>
    %58 = arith.addf %57, %56 : vector<8x128xf32>
    %59 = arith.mulf %45, %58 : vector<8x128xf32>
    %60 = arith.addf %54, %59 : vector<8x128xf32>
    %c0_15 = arith.constant 0 : index
    %c0_16 = arith.constant 0 : index
    %61 = vector.load %arg8[%c0_15, %c0_16] : memref<128x128xbf16, #tpu.memory_space<vmem>>, vector<128x128xbf16>
    %62 = arith.extf %61 : vector<128x128xbf16> to vector<128x128xf32>
    %cst_17 = arith.constant dense<0.000000e+00> : vector<8x128xf32>
    %63 = tpu.matmul %60, %62, %cst_17 {dimension_numbers = #tpu.dot_dimension_numbers<[1], [0], [0], [1], [0, 0, 1, 1], [], []>} : vector<8x128xf32>, vector<128x128xf32>, vector<8x128xf32> -> vector<8x128xf32>
    %cst_18 = arith.constant 0.0333333351 : f32
    %64 = vector.broadcast %cst_18 : f32 to vector<8x128xf32>
    %65 = arith.mulf %63, %64 : vector<8x128xf32>
    %c0_19 = arith.constant 0 : index
    %c0_20 = arith.constant 0 : index
    %66 = vector.load %arg9[%c0_19, %c0_20] : memref<8x128xf32, #tpu.memory_space<vmem>>, vector<8x128xf32>
    tpu.vector_store %arg9[%c0_19, %c0_20], %65 {strides = array<i32>} : memref<8x128xf32, #tpu.memory_space<vmem>>, vector<8x128xf32>,
    return
  }
  func.func @transform_0(%arg0: i32) -> (i32, i32) {
    %c0_i32 = arith.constant 0 : i32
    %c0_i32_0 = arith.constant 0 : i32
    return %arg0, %c0_i32 : i32, i32
  }
  func.func @transform_1(%arg0: i32) -> (i32, i32) {
    %c0_i32 = arith.constant 0 : i32
    %c0_i32_0 = arith.constant 0 : i32
    %c0_i32_1 = arith.constant 0 : i32
    return %c0_i32, %c0_i32_0 : i32, i32
  }
  func.func @transform_2(%arg0: i32) -> (i32, i32) {
    %c0_i32 = arith.constant 0 : i32
    %c0_i32_0 = arith.constant 0 : i32
    %c0_i32_1 = arith.constant 0 : i32
    return %c0_i32, %c0_i32_0 : i32, i32
  }
  func.func @transform_3(%arg0: i32) -> (i32, i32) {
    %c0_i32 = arith.constant 0 : i32
    %c0_i32_0 = arith.constant 0 : i32
    %c0_i32_1 = arith.constant 0 : i32
    return %c0_i32, %c0_i32_0 : i32, i32
  }
  func.func @transform_4(%arg0: i32) -> (i32, i32) {
    %c0_i32 = arith.constant 0 : i32
    %c0_i32_0 = arith.constant 0 : i32
    %c0_i32_1 = arith.constant 0 : i32
    return %c0_i32, %c0_i32_0 : i32, i32
  }
  func.func @transform_5(%arg0: i32) -> (i32, i32) {
    %c0_i32 = arith.constant 0 : i32
    %c0_i32_0 = arith.constant 0 : i32
    %c0_i32_1 = arith.constant 0 : i32
    return %c0_i32, %c0_i32_0 : i32, i32
  }
  func.func @transform_6(%arg0: i32) -> (i32, i32) {
    %c0_i32 = arith.constant 0 : i32
    %c0_i32_0 = arith.constant 0 : i32
    %c0_i32_1 = arith.constant 0 : i32
    return %c0_i32, %c0_i32_0 : i32, i32
  }
  func.func @transform_7(%arg0: i32) -> (i32, i32) {
    %c0_i32 = arith.constant 0 : i32
    %c0_i32_0 = arith.constant 0 : i32
    %c0_i32_1 = arith.constant 0 : i32
    return %c0_i32, %c0_i32_0 : i32, i32
  }
  func.func @transform_8(%arg0: i32) -> (i32, i32) {
    %c0_i32 = arith.constant 0 : i32
    %c0_i32_0 = arith.constant 0 : i32
    return %arg0, %c0_i32 : i32, i32
  }
}

</mosaic_0001>

<llo_original>
// kernel: tpu_custom_call.1
$region0: #{tpu_custom_call.1}
  #allocation0 [shape = 'u32[]', space=smem, size = 0x4, offset = 0x4, fixed_abs, tag = 'smem constant byte address 0x4 - core index']
  #allocation1 [shape = 'u32[144,128]{1,0:T(1,128)}', space=vmem, size = 0x12000, scoped, tag = 'internal scratch']
  %s0 = inlined_call_operand.hbm [shape: f32[8,128], index: 0, kind: input, shape index: {}]
  %s1 = inlined_call_operand.hbm [shape: bf16[128,256], index: 1, kind: input, shape index: {}]
  %s2 = inlined_call_operand.hbm [shape: f32[8,128], index: 2, kind: input, shape index: {}]
  %s3 = inlined_call_operand.hbm [shape: bf16[128,256], index: 3, kind: input, shape index: {}]
  %s4 = inlined_call_operand.vmem [shape: f32[8,128], index: 4, kind: input, shape index: {}]
  %s5 = inlined_call_operand.hbm [shape: bf16[128,256], index: 5, kind: input, shape index: {}]
  %s6 = inlined_call_operand.vmem [shape: f32[8,128], index: 6, kind: input, shape index: {}]
  %s7 = inlined_call_operand.hbm [shape: bf16[128,128], index: 7, kind: input, shape index: {}]
  %s8 = inlined_call_operand.hbm [shape: f32[8,128], index: 8, kind: output, shape index: {}]
  %s9 = sld [smem:[#allocation0]]
  $region66: #{tpu_custom_call.1} parent=0
    _
  %s11 = ssub.s32 1, %s9
  %s12 = scalar_select 0, %s11, %s9
  $region1: #{tpu_custom_call.1} parent=0
    #allocation2 [shape = 'u8[4096]{0}', space=vmem, size = 0x1000, scoped, tag = 'input window, operand 0, single buffered']
    #allocation3 [shape = 's32[1]{0}', space=sflag, size = 0x4, scoped, tag = 'scoped memory for tpu_custom_call.1']
    #allocation4 [shape = 's32[1]{0}', space=sflag, size = 0x4, scoped, tag = 'scoped memory for tpu_custom_call.1']
    #allocation5 [shape = 'u8[65536]{0}', space=vmem, size = 0x10000, scoped, tag = 'input window, operand 1, single buffered']
    #allocation6 [shape = 's32[1]{0}', space=sflag, size = 0x4, scoped, tag = 'scoped memory for tpu_custom_call.1']
    #allocation7 [shape = 'u8[4096]{0}', space=vmem, size = 0x1000, scoped, tag = 'input window, operand 2, single buffered']
    #allocation8 [shape = 'u8[65536]{0}', space=vmem, size = 0x10000, scoped, tag = 'input window, operand 3, single buffered']
    #allocation9 [shape = 's32[1]{0}', space=sflag, size = 0x4, scoped, tag = 'scoped memory for tpu_custom_call.1']
    #allocation10 [shape = 'u8[65536]{0}', space=vmem, size = 0x10000, scoped, tag = 'input window, operand 5, single buffered']
    #allocation11 [shape = 'u8[32768]{0}', space=vmem, size = 0x8000, scoped, tag = 'input window, operand 7, single buffered']
    #allocation12 [shape = 's32[1]{0}', space=sflag, size = 0x4, scoped, tag = 'scoped memory for tpu_custom_call.1']
    #allocation13 [shape = 'u8[4096]{0}', space=vmem, size = 0x1000, scoped, tag = 'output window, operand 0, single buffered']
    %13 = vsyncpa [#allocation3], 0
    %14 = vsyncpa [#allocation6], 0
    %15 = vsyncpa [#allocation9], 0
    %16 = vsyncpa [#allocation12], 0
    %17 = vsyncpa [#allocation4], 0
    // Predicated region
    $region2: #{tpu_custom_call.1} parent=1 // pred_check
      _
    $region3: #{tpu_custom_call.1} parent=1 // pred_check_branch
      %19 = sbr.rel (0) target = $region5
    $region4: #{tpu_custom_call.1} parent=1 // pred_region
      %s21 = ssub.s32 128, 128
      %22 = vsyncadd [#allocation3], %s21
      %s24 = sshll.u32 [#allocation2], 4
      %s25 = int_to_ptr.vmem [resolvable:$true] %s24
      %27 = dma.hbm_to_vmem [thread:$0]  %s0, 128, %s25, [#allocation3]
    $region5: #{tpu_custom_call.1} parent=1 // pred_fallthru
      _
    // Predicated region
    $region6: #{tpu_custom_call.1} parent=1 // pred_check
      _
    $region7: #{tpu_custom_call.1} parent=1 // pred_check_branch
      %29 = sbr.rel (0) target = $region9
    $region8: #{tpu_custom_call.1} parent=1 // pred_region
      %s31 = ssub.s32 2048, 2048
      %32 = vsyncadd [#allocation6], %s31
      %s33 = sshll.u32 [#allocation5], 4
      %s34 = int_to_ptr.vmem [resolvable:$true] %s33
      %39 = dma.hbm_to_vmem [thread:$0]  %s1, 2048, %s34, [#allocation6], 128, 128, 8
    $region9: #{tpu_custom_call.1} parent=1 // pred_fallthru
      _
    // Predicated region
    $region10: #{tpu_custom_call.1} parent=1 // pred_check
      _
    $region11: #{tpu_custom_call.1} parent=1 // pred_check_branch
      %41 = sbr.rel (0) target = $region13
    $region12: #{tpu_custom_call.1} parent=1 // pred_region
      %s43 = ssub.s32 128, 128
      %44 = vsyncadd [#allocation6], %s43
      %s46 = sshll.u32 [#allocation7], 4
      %s47 = int_to_ptr.vmem [resolvable:$true] %s46
      %49 = dma.hbm_to_vmem [thread:$0]  %s2, 128, %s47, [#allocation6]
    $region13: #{tpu_custom_call.1} parent=1 // pred_fallthru
      _
    // Predicated region
    $region14: #{tpu_custom_call.1} parent=1 // pred_check
      _
    $region15: #{tpu_custom_call.1} parent=1 // pred_check_branch
      %51 = sbr.rel (0) target = $region17
    $region16: #{tpu_custom_call.1} parent=1 // pred_region
      %s53 = ssub.s32 2048, 2048
      %54 = vsyncadd [#allocation9], %s53
      %s55 = sshll.u32 [#allocation8], 4
      %s56 = int_to_ptr.vmem [resolvable:$true] %s55
      %61 = dma.hbm_to_vmem [thread:$0]  %s3, 2048, %s56, [#allocation9], 128, 128, 8
    $region17: #{tpu_custom_call.1} parent=1 // pred_fallthru
      _
    // Predicated region
    $region18: #{tpu_custom_call.1} parent=1 // pred_check
      _
    $region19: #{tpu_custom_call.1} parent=1 // pred_check_branch
      %63 = sbr.rel (0) target = $region21
    $region20: #{tpu_custom_call.1} parent=1 // pred_region
      _
    $region21: #{tpu_custom_call.1} parent=1 // pred_fallthru
      _
    // Predicated region
    $region22: #{tpu_custom_call.1} parent=1 // pred_check
      _
    $region23: #{tpu_custom_call.1} parent=1 // pred_check_branch
      %65 = sbr.rel (0) target = $region25
    $region24: #{tpu_custom_call.1} parent=1 // pred_region
      %s67 = ssub.s32 2048, 2048
      %68 = vsyncadd [#allocation9], %s67
      %s69 = sshll.u32 [#allocation10], 4
      %s70 = int_to_ptr.vmem [resolvable:$true] %s69
      %75 = dma.hbm_to_vmem [thread:$0]  %s5, 2048, %s70, [#allocation9], 128, 128, 8
    $region25: #{tpu_custom_call.1} parent=1 // pred_fallthru
      _
    // Predicated region
    $region26: #{tpu_custom_call.1} parent=1 // pred_check
      _
    $region27: #{tpu_custom_call.1} parent=1 // pred_check_branch
      %77 = sbr.rel (0) target = $region29
    $region28: #{tpu_custom_call.1} parent=1 // pred_region
      _
    $region29: #{tpu_custom_call.1} parent=1 // pred_fallthru
      _
    // Predicated region
    $region30: #{tpu_custom_call.1} parent=1 // pred_check
      _
    $region31: #{tpu_custom_call.1} parent=1 // pred_check_branch
      %79 = sbr.rel (0) target = $region33
    $region32: #{tpu_custom_call.1} parent=1 // pred_region
      %s81 = ssub.s32 1024, 1024
      %82 = vsyncadd [#allocation12], %s81
      %s83 = sshll.u32 [#allocation11], 4
      %s84 = int_to_ptr.vmem [resolvable:$true] %s83
      %89 = dma.hbm_to_vmem [thread:$0]  %s7, 1024, %s84, [#allocation12], 64, 64, 4
    $region33: #{tpu_custom_call.1} parent=1 // pred_fallthru
      _
    // Predicated region
    $region34: #{tpu_custom_call.1} parent=1 // pred_check
      _
    $region35: #{tpu_custom_call.1} parent=1 // pred_check_branch
      %91 = sbr.rel (0) target = $region37
    $region36: #{tpu_custom_call.1} parent=1 // pred_region
      %92 = dma.done [#allocation3], 128
    $region37: #{tpu_custom_call.1} parent=1 // pred_fallthru
      _
    // Predicated region
    $region38: #{tpu_custom_call.1} parent=1 // pred_check
      _
    $region39: #{tpu_custom_call.1} parent=1 // pred_check_branch
      %94 = sbr.rel (0) target = $region41
    $region40: #{tpu_custom_call.1} parent=1 // pred_region
      %95 = dma.done [#allocation6], 2048
    $region41: #{tpu_custom_call.1} parent=1 // pred_fallthru
      _
    // Predicated region
    $region42: #{tpu_custom_call.1} parent=1 // pred_check
      _
    $region43: #{tpu_custom_call.1} parent=1 // pred_check_branch
      %97 = sbr.rel (0) target = $region45
    $region44: #{tpu_custom_call.1} parent=1 // pred_region
      %98 = dma.done [#allocation6], 128
    $region45: #{tpu_custom_call.1} parent=1 // pred_fallthru
      _
    // Predicated region
    $region46: #{tpu_custom_call.1} parent=1 // pred_check
      _
    $region47: #{tpu_custom_call.1} parent=1 // pred_check_branch
      %100 = sbr.rel (0) target = $region49
    $region48: #{tpu_custom_call.1} parent=1 // pred_region
      %101 = dma.done [#allocation9], 2048
    $region49: #{tpu_custom_call.1} parent=1 // pred_fallthru
      _
    // Predicated region
    $region50: #{tpu_custom_call.1} parent=1 // pred_check
      _
    $region51: #{tpu_custom_call.1} parent=1 // pred_check_branch
      %103 = sbr.rel (0) target = $region53
    $region52: #{tpu_custom_call.1} parent=1 // pred_region
      %104 = dma.done [#allocation9], 2048
    $region53: #{tpu_custom_call.1} parent=1 // pred_fallthru
      _
    // Predicated region
    $region54: #{tpu_custom_call.1} parent=1 // pred_check
      _
    $region55: #{tpu_custom_call.1} parent=1 // pred_check_branch
      %106 = sbr.rel (0) target = $region57
    $region56: #{tpu_custom_call.1} parent=1 // pred_region
      %107 = dma.done [#allocation12], 1024
    $region57: #{tpu_custom_call.1} parent=1 // pred_fallthru
      _
    %v108 = vld [vmem:[#allocation2] sm:$0xff]
    %v109 = vld [vmem:[#allocation5] sm:$0xff]
    %v110 = vld [vmem:[#allocation5 + $0x8] sm:$0xff]
    %v111 = vld [vmem:[#allocation5 + $0x10] sm:$0xff]
    %v112 = vld [vmem:[#allocation5 + $0x18] sm:$0xff]
    %v113 = vld [vmem:[#allocation5 + $0x20] sm:$0xff]
    %v114 = vld [vmem:[#allocation5 + $0x28] sm:$0xff]
    %v115 = vld [vmem:[#allocation5 + $0x30] sm:$0xff]
    %v116 = vld [vmem:[#allocation5 + $0x38] sm:$0xff]
    %v117 = vld [vmem:[#allocation5 + $0x40] sm:$0xff]
    %v118 = vld [vmem:[#allocation5 + $0x48] sm:$0xff]
    %v119 = vld [vmem:[#allocation5 + $0x50] sm:$0xff]
    %v120 = vld [vmem:[#allocation5 + $0x58] sm:$0xff]
    %v121 = vld [vmem:[#allocation5 + $0x60] sm:$0xff]
    %v122 = vld [vmem:[#allocation5 + $0x68] sm:$0xff]
    %v123 = vld [vmem:[#allocation5 + $0x70] sm:$0xff]
    %v124 = vld [vmem:[#allocation5 + $0x78] sm:$0xff]
    %v125 = vld [vmem:[#allocation7] sm:$0xff]
    %v126 = vunpack.c.l.bf16 %v109
    %v127 = vunpack.c.h.bf16 %v109
    %v128 = vunpack.c.l.bf16 %v110
    %v129 = vunpack.c.h.bf16 %v110
    %v130 = vunpack.c.l.bf16 %v111
    %v131 = vunpack.c.h.bf16 %v111
    %v132 = vunpack.c.l.bf16 %v112
    %v133 = vunpack.c.h.bf16 %v112
    %v134 = vunpack.c.l.bf16 %v113
    %v135 = vunpack.c.h.bf16 %v113
    %v136 = vunpack.c.l.bf16 %v114
    %v137 = vunpack.c.h.bf16 %v114
    %v138 = vunpack.c.l.bf16 %v115
    %v139 = vunpack.c.h.bf16 %v115
    %v140 = vunpack.c.l.bf16 %v116
    %v141 = vunpack.c.h.bf16 %v116
    %v142 = vunpack.c.l.bf16 %v117
    %v143 = vunpack.c.h.bf16 %v117
    %v144 = vunpack.c.l.bf16 %v118
    %v145 = vunpack.c.h.bf16 %v118
    %v146 = vunpack.c.l.bf16 %v119
    %v147 = vunpack.c.h.bf16 %v119
    %v148 = vunpack.c.l.bf16 %v120
    %v149 = vunpack.c.h.bf16 %v120
    %v150 = vunpack.c.l.bf16 %v121
    %v151 = vunpack.c.h.bf16 %v121
    %v152 = vunpack.c.l.bf16 %v122
    %v153 = vunpack.c.h.bf16 %v122
    %v154 = vunpack.c.l.bf16 %v123
    %v155 = vunpack.c.h.bf16 %v123
    %v156 = vunpack.c.l.bf16 %v124
    %v157 = vunpack.c.h.bf16 %v124
    %158 = vmatprep.subr.mxu0 %v127
    %159 = vmatpush1.msra.mxu0 %v126
    %160 = vmatprep.subr.mxu0 %v129
    %161 = vmatpush1.msra.mxu0 %v128
    %162 = vmatprep.subr.mxu0 %v131
    %163 = vmatpush1.msra.mxu0 %v130
    %164 = vmatprep.subr.mxu0 %v133
    %165 = vmatpush1.msra.mxu0 %v132
    %166 = vmatprep.subr.mxu0 %v135
    %167 = vmatpush1.msra.mxu0 %v134
    %168 = vmatprep.subr.mxu0 %v137
    %169 = vmatpush1.msra.mxu0 %v136
    %170 = vmatprep.subr.mxu0 %v139
    %171 = vmatpush1.msra.mxu0 %v138
    %172 = vmatprep.subr.mxu0 %v141
    %173 = vmatpush1.msra.mxu0 %v140
    %174 = vmatprep.subr.mxu0 %v143
    %175 = vmatpush1.msra.mxu0 %v142
    %176 = vmatprep.subr.mxu0 %v145
    %177 = vmatpush1.msra.mxu0 %v144
    %178 = vmatprep.subr.mxu0 %v147
    %179 = vmatpush1.msra.mxu0 %v146
    %180 = vmatprep.subr.mxu0 %v149
    %181 = vmatpush1.msra.mxu0 %v148
    %182 = vmatprep.subr.mxu0 %v151
    %183 = vmatpush1.msra.mxu0 %v150
    %184 = vmatprep.subr.mxu0 %v153
    %185 = vmatpush1.msra.mxu0 %v152
    %186 = vmatprep.subr.mxu0 %v155
    %187 = vmatpush1.msra.mxu0 %v154
    %188 = vmatprep.subr.mxu0 %v157
    %189 = vmatpush1.msra.mxu0 %v156
    %190 = vmatprep.subr.mxu0 0.0
    %191 = vmatpush1.msra.mxu0 0.0
    %192 = vmatprep.subr.mxu0 0.0
    %193 = vmatpush1.msra.mxu0 0.0
    %194 = vmatprep.subr.mxu0 0.0
    %195 = vmatpush1.msra.mxu0 0.0
    %196 = vmatprep.subr.mxu0 0.0
    %197 = vmatpush1.msra.mxu0 0.0
    %198 = vmatprep.subr.mxu0 0.0
    %199 = vmatpush1.msra.mxu0 0.0
    %200 = vmatprep.subr.mxu0 0.0
    %201 = vmatpush1.msra.mxu0 0.0
    %202 = vmatprep.subr.mxu0 0.0
    %203 = vmatpush1.msra.mxu0 0.0
    %204 = vmatprep.subr.mxu0 0.0
    %205 = vmatpush1.msra.mxu0 0.0
    %206 = vmatprep.subr.mxu0 0.0
    %207 = vmatpush1.msra.mxu0 0.0
    %208 = vmatprep.subr.mxu0 0.0
    %209 = vmatpush1.msra.mxu0 0.0
    %210 = vmatprep.subr.mxu0 0.0
    %211 = vmatpush1.msra.mxu0 0.0
    %212 = vmatprep.subr.mxu0 0.0
    %213 = vmatpush1.msra.mxu0 0.0
    %214 = vmatprep.subr.mxu0 0.0
    %215 = vmatpush1.msra.mxu0 0.0
    %216 = vmatprep.subr.mxu0 0.0
    %217 = vmatpush1.msra.mxu0 0.0
    %218 = vmatprep.subr.mxu0 0.0
    %219 = vmatpush1.msra.mxu0 0.0
    %220 = vmatprep.subr.mxu0 0.0
    %221 = vmatpush1.msra.mxu0 0.0
    %222 = vmatprep.mubr.f32.mxu0 0.0
    %223 = vmatmul.mubr.f32.gmra.mrb[0].mxu0 %v108
    %v224 = vpop.f32.mrb[0].mxu0
    %v225 = vadd.f32 0.0, %v224
    %v226 = vpop.f32.mrb[0].mxu0
    %v227 = vadd.f32 0.0, %v226
    %228 = vdwg.mxu0
    %v229 = vlaneseq
    %v230 = vshrl.u32 %v229, 7
    %v231 = vsub.s32 2, %v230
    %v232 = vrot.slane %v125, %v231
    %v233 = vmul.f32 %v232, %v227
    %v234 = vlaneseq
    %v235 = vshrl.u32 %v234, 7
    %v236 = vsub.s32 0, %v235
    %v237 = vrot.slane %v125, %v236
    %v238 = vadd.f32 %v237, %v233
    %v239 = vlaneseq
    %v240 = vshrl.u32 %v239, 7
    %v241 = vsub.s32 3, %v240
    %v242 = vrot.slane %v125, %v241
    %v243 = vmul.f32 %v242, %v227
    %v244 = vlaneseq
    %v245 = vshrl.u32 %v244, 7
    %v246 = vsub.s32 1, %v245
    %v247 = vrot.slane %v125, %v246
    %v248 = vadd.f32 %v247, %v243
    %v249 = vmul.f32 %v225, %v248
    %v250 = vadd.f32 %v238, %v249
    %v251 = vld [vmem:[#allocation8] sm:$0xff]
    %v252 = vld [vmem:[#allocation8 + $0x8] sm:$0xff]
    %v253 = vld [vmem:[#allocation8 + $0x10] sm:$0xff]
    %v254 = vld [vmem:[#allocation8 + $0x18] sm:$0xff]
    %v255 = vld [vmem:[#allocation8 + $0x20] sm:$0xff]
    %v256 = vld [vmem:[#allocation8 + $0x28] sm:$0xff]
    %v257 = vld [vmem:[#allocation8 + $0x30] sm:$0xff]
    %v258 = vld [vmem:[#allocation8 + $0x38] sm:$0xff]
    %v259 = vld [vmem:[#allocation8 + $0x40] sm:$0xff]
    %v260 = vld [vmem:[#allocation8 + $0x48] sm:$0xff]
    %v261 = vld [vmem:[#allocation8 + $0x50] sm:$0xff]
    %v262 = vld [vmem:[#allocation8 + $0x58] sm:$0xff]
    %v263 = vld [vmem:[#allocation8 + $0x60] sm:$0xff]
    %v264 = vld [vmem:[#allocation8 + $0x68] sm:$0xff]
    %v265 = vld [vmem:[#allocation8 + $0x70] sm:$0xff]
    %v266 = vld [vmem:[#allocation8 + $0x78] sm:$0xff]
    %v267 = vld [vmem:[%s4] sm:$0xff]
    %v268 = vunpack.c.l.bf16 %v251
    %v269 = vunpack.c.h.bf16 %v251
    %v270 = vunpack.c.l.bf16 %v252
    %v271 = vunpack.c.h.bf16 %v252
    %v272 = vunpack.c.l.bf16 %v253
    %v273 = vunpack.c.h.bf16 %v253
    %v274 = vunpack.c.l.bf16 %v254
    %v275 = vunpack.c.h.bf16 %v254
    %v276 = vunpack.c.l.bf16 %v255
    %v277 = vunpack.c.h.bf16 %v255
    %v278 = vunpack.c.l.bf16 %v256
    %v279 = vunpack.c.h.bf16 %v256
    %v280 = vunpack.c.l.bf16 %v257
    %v281 = vunpack.c.h.bf16 %v257
    %v282 = vunpack.c.l.bf16 %v258
    %v283 = vunpack.c.h.bf16 %v258
    %v284 = vunpack.c.l.bf16 %v259
    %v285 = vunpack.c.h.bf16 %v259
    %v286 = vunpack.c.l.bf16 %v260
    %v287 = vunpack.c.h.bf16 %v260
    %v288 = vunpack.c.l.bf16 %v261
    %v289 = vunpack.c.h.bf16 %v261
    %v290 = vunpack.c.l.bf16 %v262
    %v291 = vunpack.c.h.bf16 %v262
    %v292 = vunpack.c.l.bf16 %v263
    %v293 = vunpack.c.h.bf16 %v263
    %v294 = vunpack.c.l.bf16 %v264
    %v295 = vunpack.c.h.bf16 %v264
    %v296 = vunpack.c.l.bf16 %v265
    %v297 = vunpack.c.h.bf16 %v265
    %v298 = vunpack.c.l.bf16 %v266
    %v299 = vunpack.c.h.bf16 %v266
    %300 = vmatprep.subr.mxu0 %v269
    %301 = vmatpush1.msra.mxu0 %v268
    %302 = vmatprep.subr.mxu0 %v271
    %303 = vmatpush1.msra.mxu0 %v270
    %304 = vmatprep.subr.mxu0 %v273
    %305 = vmatpush1.msra.mxu0 %v272
    %306 = vmatprep.subr.mxu0 %v275
    %307 = vmatpush1.msra.mxu0 %v274
    %308 = vmatprep.subr.mxu0 %v277
    %309 = vmatpush1.msra.mxu0 %v276
    %310 = vmatprep.subr.mxu0 %v279
    %311 = vmatpush1.msra.mxu0 %v278
    %312 = vmatprep.subr.mxu0 %v281
    %313 = vmatpush1.msra.mxu0 %v280
    %314 = vmatprep.subr.mxu0 %v283
    %315 = vmatpush1.msra.mxu0 %v282
    %316 = vmatprep.subr.mxu0 %v285
    %317 = vmatpush1.msra.mxu0 %v284
    %318 = vmatprep.subr.mxu0 %v287
    %319 = vmatpush1.msra.mxu0 %v286
    %320 = vmatprep.subr.mxu0 %v289
    %321 = vmatpush1.msra.mxu0 %v288
    %322 = vmatprep.subr.mxu0 %v291
    %323 = vmatpush1.msra.mxu0 %v290
    %324 = vmatprep.subr.mxu0 %v293
    %325 = vmatpush1.msra.mxu0 %v292
    %326 = vmatprep.subr.mxu0 %v295
    %327 = vmatpush1.msra.mxu0 %v294
    %328 = vmatprep.subr.mxu0 %v297
    %329 = vmatpush1.msra.mxu0 %v296
    %330 = vmatprep.subr.mxu0 %v299
    %331 = vmatpush1.msra.mxu0 %v298
    %332 = vmatprep.subr.mxu0 0.0
    %333 = vmatpush1.msra.mxu0 0.0
    %334 = vmatprep.subr.mxu0 0.0
    %335 = vmatpush1.msra.mxu0 0.0
    %336 = vmatprep.subr.mxu0 0.0
    %337 = vmatpush1.msra.mxu0 0.0
    %338 = vmatprep.subr.mxu0 0.0
    %339 = vmatpush1.msra.mxu0 0.0
    %340 = vmatprep.subr.mxu0 0.0
    %341 = vmatpush1.msra.mxu0 0.0
    %342 = vmatprep.subr.mxu0 0.0
    %343 = vmatpush1.msra.mxu0 0.0
    %344 = vmatprep.subr.mxu0 0.0
    %345 = vmatpush1.msra.mxu0 0.0
    %346 = vmatprep.subr.mxu0 0.0
    %347 = vmatpush1.msra.mxu0 0.0
    %348 = vmatprep.subr.mxu0 0.0
    %349 = vmatpush1.msra.mxu0 0.0
    %350 = vmatprep.subr.mxu0 0.0
    %351 = vmatpush1.msra.mxu0 0.0
    %352 = vmatprep.subr.mxu0 0.0
    %353 = vmatpush1.msra.mxu0 0.0
    %354 = vmatprep.subr.mxu0 0.0
    %355 = vmatpush1.msra.mxu0 0.0
    %356 = vmatprep.subr.mxu0 0.0
    %357 = vmatpush1.msra.mxu0 0.0
    %358 = vmatprep.subr.mxu0 0.0
    %359 = vmatpush1.msra.mxu0 0.0
    %360 = vmatprep.subr.mxu0 0.0
    %361 = vmatpush1.msra.mxu0 0.0
    %362 = vmatprep.subr.mxu0 0.0
    %363 = vmatpush1.msra.mxu0 0.0
    %364 = vmatprep.mubr.f32.mxu0 0.0
    %365 = vmatmul.mubr.f32.gmra.mrb[0].mxu0 %v250
    %v366 = vpop.f32.mrb[0].mxu0
    %v367 = vadd.f32 0.0, %v366
    %v368 = vpop.f32.mrb[0].mxu0
    %v369 = vadd.f32 0.0, %v368
    %370 = vdwg.mxu0
    %v371 = vlaneseq
    %v372 = vshrl.u32 %v371, 7
    %v373 = vsub.s32 2, %v372
    %v374 = vrot.slane %v267, %v373
    %v375 = vmul.f32 %v374, %v369
    %v376 = vlaneseq
    %v377 = vshrl.u32 %v376, 7
    %v378 = vsub.s32 0, %v377
    %v379 = vrot.slane %v267, %v378
    %v380 = vadd.f32 %v379, %v375
    %v381 = vlaneseq
    %v382 = vshrl.u32 %v381, 7
    %v383 = vsub.s32 3, %v382
    %v384 = vrot.slane %v267, %v383
    %v385 = vmul.f32 %v384, %v369
    %v386 = vlaneseq
    %v387 = vshrl.u32 %v386, 7
    %v388 = vsub.s32 1, %v387
    %v389 = vrot.slane %v267, %v388
    %v390 = vadd.f32 %v389, %v385
    %v391 = vmul.f32 %v367, %v390
    %v392 = vadd.f32 %v380, %v391
    %v393 = vld [vmem:[#allocation10] sm:$0xff]
    %v394 = vld [vmem:[#allocation10 + $0x8] sm:$0xff]
    %v395 = vld [vmem:[#allocation10 + $0x10] sm:$0xff]
    %v396 = vld [vmem:[#allocation10 + $0x18] sm:$0xff]
    %v397 = vld [vmem:[#allocation10 + $0x20] sm:$0xff]
    %v398 = vld [vmem:[#allocation10 + $0x28] sm:$0xff]
    %v399 = vld [vmem:[#allocation10 + $0x30] sm:$0xff]
    %v400 = vld [vmem:[#allocation10 + $0x38] sm:$0xff]
    %v401 = vld [vmem:[#allocation10 + $0x40] sm:$0xff]
    %v402 = vld [vmem:[#allocation10 + $0x48] sm:$0xff]
    %v403 = vld [vmem:[#allocation10 + $0x50] sm:$0xff]
    %v404 = vld [vmem:[#allocation10 + $0x58] sm:$0xff]
    %v405 = vld [vmem:[#allocation10 + $0x60] sm:$0xff]
    %v406 = vld [vmem:[#allocation10 + $0x68] sm:$0xff]
    %v407 = vld [vmem:[#allocation10 + $0x70] sm:$0xff]
    %v408 = vld [vmem:[#allocation10 + $0x78] sm:$0xff]
    %v409 = vld [vmem:[%s6] sm:$0xff]
    %v410 = vunpack.c.l.bf16 %v393
    %v411 = vunpack.c.h.bf16 %v393
    %v412 = vunpack.c.l.bf16 %v394
    %v413 = vunpack.c.h.bf16 %v394
    %v414 = vunpack.c.l.bf16 %v395
    %v415 = vunpack.c.h.bf16 %v395
    %v416 = vunpack.c.l.bf16 %v396
    %v417 = vunpack.c.h.bf16 %v396
    %v418 = vunpack.c.l.bf16 %v397
    %v419 = vunpack.c.h.bf16 %v397
    %v420 = vunpack.c.l.bf16 %v398
    %v421 = vunpack.c.h.bf16 %v398
    %v422 = vunpack.c.l.bf16 %v399
    %v423 = vunpack.c.h.bf16 %v399
    %v424 = vunpack.c.l.bf16 %v400
    %v425 = vunpack.c.h.bf16 %v400
    %v426 = vunpack.c.l.bf16 %v401
    %v427 = vunpack.c.h.bf16 %v401
    %v428 = vunpack.c.l.bf16 %v402
    %v429 = vunpack.c.h.bf16 %v402
    %v430 = vunpack.c.l.bf16 %v403
    %v431 = vunpack.c.h.bf16 %v403
    %v432 = vunpack.c.l.bf16 %v404
    %v433 = vunpack.c.h.bf16 %v404
    %v434 = vunpack.c.l.bf16 %v405
    %v435 = vunpack.c.h.bf16 %v405
    %v436 = vunpack.c.l.bf16 %v406
    %v437 = vunpack.c.h.bf16 %v406
    %v438 = vunpack.c.l.bf16 %v407
    %v439 = vunpack.c.h.bf16 %v407
    %v440 = vunpack.c.l.bf16 %v408
    %v441 = vunpack.c.h.bf16 %v408
    %442 = vmatprep.subr.mxu0 %v411
    %443 = vmatpush1.msra.mxu0 %v410
    %444 = vmatprep.subr.mxu0 %v413
    %445 = vmatpush1.msra.mxu0 %v412
    %446 = vmatprep.subr.mxu0 %v415
    %447 = vmatpush1.msra.mxu0 %v414
    %448 = vmatprep.subr.mxu0 %v417
    %449 = vmatpush1.msra.mxu0 %v416
    %450 = vmatprep.subr.mxu0 %v419
    %451 = vmatpush1.msra.mxu0 %v418
    %452 = vmatprep.subr.mxu0 %v421
    %453 = vmatpush1.msra.mxu0 %v420
    %454 = vmatprep.subr.mxu0 %v423
    %455 = vmatpush1.msra.mxu0 %v422
    %456 = vmatprep.subr.mxu0 %v425
    %457 = vmatpush1.msra.mxu0 %v424
    %458 = vmatprep.subr.mxu0 %v427
    %459 = vmatpush1.msra.mxu0 %v426
    %460 = vmatprep.subr.mxu0 %v429
    %461 = vmatpush1.msra.mxu0 %v428
    %462 = vmatprep.subr.mxu0 %v431
    %463 = vmatpush1.msra.mxu0 %v430
    %464 = vmatprep.subr.mxu0 %v433
    %465 = vmatpush1.msra.mxu0 %v432
    %466 = vmatprep.subr.mxu0 %v435
    %467 = vmatpush1.msra.mxu0 %v434
    %468 = vmatprep.subr.mxu0 %v437
    %469 = vmatpush1.msra.mxu0 %v436
    %470 = vmatprep.subr.mxu0 %v439
    %471 = vmatpush1.msra.mxu0 %v438
    %472 = vmatprep.subr.mxu0 %v441
    %473 = vmatpush1.msra.mxu0 %v440
    %474 = vmatprep.subr.mxu0 0.0
    %475 = vmatpush1.msra.mxu0 0.0
    %476 = vmatprep.subr.mxu0 0.0
    %477 = vmatpush1.msra.mxu0 0.0
    %478 = vmatprep.subr.mxu0 0.0
    %479 = vmatpush1.msra.mxu0 0.0
    %480 = vmatprep.subr.mxu0 0.0
    %481 = vmatpush1.msra.mxu0 0.0
    %482 = vmatprep.subr.mxu0 0.0
    %483 = vmatpush1.msra.mxu0 0.0
    %484 = vmatprep.subr.mxu0 0.0
    %485 = vmatpush1.msra.mxu0 0.0
    %486 = vmatprep.subr.mxu0 0.0
    %487 = vmatpush1.msra.mxu0 0.0
    %488 = vmatprep.subr.mxu0 0.0
    %489 = vmatpush1.msra.mxu0 0.0
    %490 = vmatprep.subr.mxu0 0.0
    %491 = vmatpush1.msra.mxu0 0.0
    %492 = vmatprep.subr.mxu0 0.0
    %493 = vmatpush1.msra.mxu0 0.0
    %494 = vmatprep.subr.mxu0 0.0
    %495 = vmatpush1.msra.mxu0 0.0
    %496 = vmatprep.subr.mxu0 0.0
    %497 = vmatpush1.msra.mxu0 0.0
    %498 = vmatprep.subr.mxu0 0.0
    %499 = vmatpush1.msra.mxu0 0.0
    %500 = vmatprep.subr.mxu0 0.0
    %501 = vmatpush1.msra.mxu0 0.0
    %502 = vmatprep.subr.mxu0 0.0
    %503 = vmatpush1.msra.mxu0 0.0
    %504 = vmatprep.subr.mxu0 0.0
    %505 = vmatpush1.msra.mxu0 0.0
    %506 = vmatprep.mubr.f32.mxu0 0.0
    %507 = vmatmul.mubr.f32.gmra.mrb[0].mxu0 %v392
    %v508 = vpop.f32.mrb[0].mxu0
    %v509 = vadd.f32 0.0, %v508
    %v510 = vpop.f32.mrb[0].mxu0
    %v511 = vadd.f32 0.0, %v510
    %512 = vdwg.mxu0
    %v513 = vlaneseq
    %v514 = vshrl.u32 %v513, 7
    %v515 = vsub.s32 2, %v514
    %v516 = vrot.slane %v409, %v515
    %v517 = vmul.f32 %v516, %v511
    %v518 = vlaneseq
    %v519 = vshrl.u32 %v518, 7
    %v520 = vsub.s32 0, %v519
    %v521 = vrot.slane %v409, %v520
    %v522 = vadd.f32 %v521, %v517
    %v523 = vlaneseq
    %v524 = vshrl.u32 %v523, 7
    %v525 = vsub.s32 3, %v524
    %v526 = vrot.slane %v409, %v525
    %v527 = vmul.f32 %v526, %v511
    %v528 = vlaneseq
    %v529 = vshrl.u32 %v528, 7
    %v530 = vsub.s32 1, %v529
    %v531 = vrot.slane %v409, %v530
    %v532 = vadd.f32 %v531, %v527
    %v533 = vmul.f32 %v509, %v532
    %v534 = vadd.f32 %v522, %v533
    %v535 = vld [vmem:[#allocation11] sm:$0xf]
    %v536 = vld [vmem:[#allocation11 + $0x4] sm:$0xf]
    %v537 = vld [vmem:[#allocation11 + $0x8] sm:$0xf]
    %v538 = vld [vmem:[#allocation11 + $0xc] sm:$0xf]
    %v539 = vld [vmem:[#allocation11 + $0x10] sm:$0xf]
    %v540 = vld [vmem:[#allocation11 + $0x14] sm:$0xf]
    %v541 = vld [vmem:[#allocation11 + $0x18] sm:$0xf]
    %v542 = vld [vmem:[#allocation11 + $0x1c] sm:$0xf]
    %v543 = vld [vmem:[#allocation11 + $0x20] sm:$0xf]
    %v544 = vld [vmem:[#allocation11 + $0x24] sm:$0xf]
    %v545 = vld [vmem:[#allocation11 + $0x28] sm:$0xf]
    %v546 = vld [vmem:[#allocation11 + $0x2c] sm:$0xf]
    %v547 = vld [vmem:[#allocation11 + $0x30] sm:$0xf]
    %v548 = vld [vmem:[#allocation11 + $0x34] sm:$0xf]
    %v549 = vld [vmem:[#allocation11 + $0x38] sm:$0xf]
    %v550 = vld [vmem:[#allocation11 + $0x3c] sm:$0xf]
    %v551 = vunpack.c.l.bf16 %v535
    %v552 = vunpack.c.l.bf16 %v536
    %v553 = vunpack.c.l.bf16 %v537
    %v554 = vunpack.c.l.bf16 %v538
    %v555 = vunpack.c.l.bf16 %v539
    %v556 = vunpack.c.l.bf16 %v540
    %v557 = vunpack.c.l.bf16 %v541
    %v558 = vunpack.c.l.bf16 %v542
    %v559 = vunpack.c.l.bf16 %v543
    %v560 = vunpack.c.l.bf16 %v544
    %v561 = vunpack.c.l.bf16 %v545
    %v562 = vunpack.c.l.bf16 %v546
    %v563 = vunpack.c.l.bf16 %v547
    %v564 = vunpack.c.l.bf16 %v548
    %v565 = vunpack.c.l.bf16 %v549
    %v566 = vunpack.c.l.bf16 %v550
    %567 = vmatprep.subr.mxu0 0.0
    %568 = vmatpush1.msra.mxu0 %v551
    %569 = vmatprep.subr.mxu0 0.0
    %570 = vmatpush1.msra.mxu0 %v552
    %571 = vmatprep.subr.mxu0 0.0
    %572 = vmatpush1.msra.mxu0 %v553
    %573 = vmatprep.subr.mxu0 0.0
    %574 = vmatpush1.msra.mxu0 %v554
    %575 = vmatprep.subr.mxu0 0.0
    %576 = vmatpush1.msra.mxu0 %v555
    %577 = vmatprep.subr.mxu0 0.0
    %578 = vmatpush1.msra.mxu0 %v556
    %579 = vmatprep.subr.mxu0 0.0
    %580 = vmatpush1.msra.mxu0 %v557
    %581 = vmatprep.subr.mxu0 0.0
    %582 = vmatpush1.msra.mxu0 %v558
    %583 = vmatprep.subr.mxu0 0.0
    %584 = vmatpush1.msra.mxu0 %v559
    %585 = vmatprep.subr.mxu0 0.0
    %586 = vmatpush1.msra.mxu0 %v560
    %587 = vmatprep.subr.mxu0 0.0
    %588 = vmatpush1.msra.mxu0 %v561
    %589 = vmatprep.subr.mxu0 0.0
    %590 = vmatpush1.msra.mxu0 %v562
    %591 = vmatprep.subr.mxu0 0.0
    %592 = vmatpush1.msra.mxu0 %v563
    %593 = vmatprep.subr.mxu0 0.0
    %594 = vmatpush1.msra.mxu0 %v564
    %595 = vmatprep.subr.mxu0 0.0
    %596 = vmatpush1.msra.mxu0 %v565
    %597 = vmatprep.subr.mxu0 0.0
    %598 = vmatpush1.msra.mxu0 %v566
    %599 = vmatprep.subr.mxu0 0.0
    %600 = vmatpush1.msra.mxu0 0.0
    %601 = vmatprep.subr.mxu0 0.0
    %602 = vmatpush1.msra.mxu0 0.0
    %603 = vmatprep.subr.mxu0 0.0
    %604 = vmatpush1.msra.mxu0 0.0
    %605 = vmatprep.subr.mxu0 0.0
    %606 = vmatpush1.msra.mxu0 0.0
    %607 = vmatprep.subr.mxu0 0.0
    %608 = vmatpush1.msra.mxu0 0.0
    %609 = vmatprep.subr.mxu0 0.0
    %610 = vmatpush1.msra.mxu0 0.0
    %611 = vmatprep.subr.mxu0 0.0
    %612 = vmatpush1.msra.mxu0 0.0
    %613 = vmatprep.subr.mxu0 0.0
    %614 = vmatpush1.msra.mxu0 0.0
    %615 = vmatprep.subr.mxu0 0.0
    %616 = vmatpush1.msra.mxu0 0.0
    %617 = vmatprep.subr.mxu0 0.0
    %618 = vmatpush1.msra.mxu0 0.0
    %619 = vmatprep.subr.mxu0 0.0
    %620 = vmatpush1.msra.mxu0 0.0
    %621 = vmatprep.subr.mxu0 0.0
    %622 = vmatpush1.msra.mxu0 0.0
    %623 = vmatprep.subr.mxu0 0.0
    %624 = vmatpush1.msra.mxu0 0.0
    %625 = vmatprep.subr.mxu0 0.0
    %626 = vmatpush1.msra.mxu0 0.0
    %627 = vmatprep.subr.mxu0 0.0
    %628 = vmatpush1.msra.mxu0 0.0
    %629 = vmatprep.subr.mxu0 0.0
    %630 = vmatpush1.msra.mxu0 0.0
    %631 = vmatprep.mubr.f32.mxu0 0.0
    %632 = vmatmul.mubr.f32.gmra.mrb[0].mxu0 %v534
    %v633 = vpop.f32.mrb[0].mxu0
    %v634 = vadd.f32 0.0, %v633
    %v635 = vpop.f32.mrb[0].mxu0
    %636 = vdwg.mxu0
    %v637 = vmul.f32 %v634, 0.033333335
    %638 = vst [vmem:[#allocation13] sm:$0xff] %v637
    // Predicated region
    $region58: #{tpu_custom_call.1} parent=1 // pred_check
      _
    $region59: #{tpu_custom_call.1} parent=1 // pred_check_branch
      %640 = sbr.rel (0) target = $region61
    $region60: #{tpu_custom_call.1} parent=1 // pred_region
      %s642 = ssub.s32 128, 128
      %643 = vsyncadd [#allocation4], %s642
      %s645 = sshll.u32 [#allocation13], 4
      %s646 = int_to_ptr.vmem [resolvable:$true] %s645
      %648 = dma.vmem_to_hbm [thread:$0]  %s646, 128, %s8, [#allocation4]
    $region61: #{tpu_custom_call.1} parent=1 // pred_fallthru
      _
    // Predicated region
    $region62: #{tpu_custom_call.1} parent=1 // pred_check
      _
    $region63: #{tpu_custom_call.1} parent=1 // pred_check_branch
      %650 = sbr.rel (0) target = $region65
    $region64: #{tpu_custom_call.1} parent=1 // pred_region
      %651 = dma.done [#allocation4], 128
    $region65: #{tpu_custom_call.1} parent=1 // pred_fallthru
      _
    %652 = vsyncpa [#allocation3], 1
    %653 = vsyncpa [#allocation6], 1
    %654 = vsyncpa [#allocation9], 1
    %655 = vsyncpa [#allocation12], 1
    %656 = vsyncpa [#allocation4], 1

// kernel: tpu_custom_call.1
$region0: #{tpu_custom_call.1}
  #allocation0 [shape = 'u32[]', space=smem, size = 0x4, offset = 0x4, fixed_abs, tag = 'smem constant byte address 0x4 - core index']
  #allocation1 [shape = 'u32[144,128]{1,0:T(1,128)}', space=vmem, size = 0x12000, scoped, tag = 'internal scratch']
  %s0 = inlined_call_operand.hbm [shape: f32[8,128], index: 0, kind: input, shape index: {}]
  %s1 = inlined_call_operand.hbm [shape: bf16[128,256], index: 1, kind: input, shape index: {}]
  %s2 = inlined_call_operand.hbm [shape: f32[8,128], index: 2, kind: input, shape index: {}]
  %s3 = inlined_call_operand.hbm [shape: bf16[128,256], index: 3, kind: input, shape index: {}]
  %s4 = inlined_call_operand.vmem [shape: f32[8,128], index: 4, kind: input, shape index: {}]
  %s5 = inlined_call_operand.hbm [shape: bf16[128,256], index: 5, kind: input, shape index: {}]
  %s6 = inlined_call_operand.vmem [shape: f32[8,128], index: 6, kind: input, shape index: {}]
  %s7 = inlined_call_operand.hbm [shape: bf16[128,128], index: 7, kind: input, shape index: {}]
  %s8 = inlined_call_operand.hbm [shape: f32[8,128], index: 8, kind: output, shape index: {}]
  %s9 = sld [smem:[#allocation0]]
  $region66: #{tpu_custom_call.1} parent=0
    _
  %s11 = ssub.s32 1, %s9
  %s12 = scalar_select 0, %s11, %s9
  $region1: #{tpu_custom_call.1} parent=0
    #allocation2 [shape = 'u8[4096]{0}', space=vmem, size = 0x1000, scoped, tag = 'input window, operand 0, single buffered']
    #allocation3 [shape = 's32[1]{0}', space=sflag, size = 0x4, scoped, tag = 'scoped memory for tpu_custom_call.1']
    #allocation4 [shape = 's32[1]{0}', space=sflag, size = 0x4, scoped, tag = 'scoped memory for tpu_custom_call.1']
    #allocation5 [shape = 'u8[65536]{0}', space=vmem, size = 0x10000, scoped, tag = 'input window, operand 1, single buffered']
    #allocation6 [shape = 's32[1]{0}', space=sflag, size = 0x4, scoped, tag = 'scoped memory for tpu_custom_call.1']
    #allocation7 [shape = 'u8[4096]{0}', space=vmem, size = 0x1000, scoped, tag = 'input window, operand 2, single buffered']
    #allocation8 [shape = 'u8[65536]{0}', space=vmem, size = 0x10000, scoped, tag = 'input window, operand 3, single buffered']
    #allocation9 [shape = 's32[1]{0}', space=sflag, size = 0x4, scoped, tag = 'scoped memory for tpu_custom_call.1']
    #allocation10 [shape = 'u8[65536]{0}', space=vmem, size = 0x10000, scoped, tag = 'input window, operand 5, single buffered']
    #allocation11 [shape = 'u8[32768]{0}', space=vmem, size = 0x8000, scoped, tag = 'input window, operand 7, single buffered']
    #allocation12 [shape = 's32[1]{0}', space=sflag, size = 0x4, scoped, tag = 'scoped memory for tpu_custom_call.1']
    #allocation13 [shape = 'u8[4096]{0}', space=vmem, size = 0x1000, scoped, tag = 'output window, operand 0, single buffered']
    %13 = vsyncpa [#allocation3], 0
    %14 = vsyncpa [#allocation6], 0
    %15 = vsyncpa [#allocation9], 0
    %16 = vsyncpa [#allocation12], 0
    %17 = vsyncpa [#allocation4], 0
    // Predicated region
    $region2: #{tpu_custom_call.1} parent=1 // pred_check
      _
    $region3: #{tpu_custom_call.1} parent=1 // pred_check_branch
      %19 = sbr.rel (0) target = $region5
    $region4: #{tpu_custom_call.1} parent=1 // pred_region
      %s21 = ssub.s32 128, 128
      %22 = vsyncadd [#allocation3], %s21
      %s24 = sshll.u32 [#allocation2], 4
      %s25 = int_to_ptr.vmem [resolvable:$true] %s24
      %27 = dma.hbm_to_vmem [thread:$0]  %s0, 128, %s25, [#allocation3]
    $region5: #{tpu_custom_call.1} parent=1 // pred_fallthru
      _
    // Predicated region
    $region6: #{tpu_custom_call.1} parent=1 // pred_check
      _
    $region7: #{tpu_custom_call.1} parent=1 // pred_check_branch
      %29 = sbr.rel (0) target = $region9
    $region8: #{tpu_custom_call.1} parent=1 // pred_region
      %s31 = ssub.s32 2048, 2048
      %32 = vsyncadd [#allocation6], %s31
      %s33 = sshll.u32 [#allocation5], 4
      %s34 = int_to_ptr.vmem [resolvable:$true] %s33
      %39 = dma.hbm_to_vmem [thread:$0]  %s1, 2048, %s34, [#allocation6], 128, 128, 8
    $region9: #{tpu_custom_call.1} parent=1 // pred_fallthru
      _
    // Predicated region
    $region10: #{tpu_custom_call.1} parent=1 // pred_check
      _
    $region11: #{tpu_custom_call.1} parent=1 // pred_check_branch
      %41 = sbr.rel (0) target = $region13
    $region12: #{tpu_custom_call.1} parent=1 // pred_region
      %s43 = ssub.s32 128, 128
      %44 = vsyncadd [#allocation6], %s43
      %s46 = sshll.u32 [#allocation7], 4
      %s47 = int_to_ptr.vmem [resolvable:$true] %s46
      %49 = dma.hbm_to_vmem [thread:$0]  %s2, 128, %s47, [#allocation6]
    $region13: #{tpu_custom_call.1} parent=1 // pred_fallthru
      _
    // Predicated region
    $region14: #{tpu_custom_call.1} parent=1 // pred_check
      _
    $region15: #{tpu_custom_call.1} parent=1 // pred_check_branch
      %51 = sbr.rel (0) target = $region17
    $region16: #{tpu_custom_call.1} parent=1 // pred_region
      %s53 = ssub.s32 2048, 2048
      %54 = vsyncadd [#allocation9], %s53
      %s55 = sshll.u32 [#allocation8], 4
      %s56 = int_to_ptr.vmem [resolvable:$true] %s55
      %61 = dma.hbm_to_vmem [thread:$0]  %s3, 2048, %s56, [#allocation9], 128, 128, 8
    $region17: #{tpu_custom_call.1} parent=1 // pred_fallthru
      _
    // Predicated region
    $region18: #{tpu_custom_call.1} parent=1 // pred_check
      _
    $region19: #{tpu_custom_call.1} parent=1 // pred_check_branch
      %63 = sbr.rel (0) target = $region21
    $region20: #{tpu_custom_call.1} parent=1 // pred_region
      _
    $region21: #{tpu_custom_call.1} parent=1 // pred_fallthru
      _
    // Predicated region
    $region22: #{tpu_custom_call.1} parent=1 // pred_check
      _
    $region23: #{tpu_custom_call.1} parent=1 // pred_check_branch
      %65 = sbr.rel (0) target = $region25
    $region24: #{tpu_custom_call.1} parent=1 // pred_region
      %s67 = ssub.s32 2048, 2048
      %68 = vsyncadd [#allocation9], %s67
      %s69 = sshll.u32 [#allocation10], 4
      %s70 = int_to_ptr.vmem [resolvable:$true] %s69
      %75 = dma.hbm_to_vmem [thread:$0]  %s5, 2048, %s70, [#allocation9], 128, 128, 8
    $region25: #{tpu_custom_call.1} parent=1 // pred_fallthru
      _
    // Predicated region
    $region26: #{tpu_custom_call.1} parent=1 // pred_check
      _
    $region27: #{tpu_custom_call.1} parent=1 // pred_check_branch
      %77 = sbr.rel (0) target = $region29
    $region28: #{tpu_custom_call.1} parent=1 // pred_region
      _
    $region29: #{tpu_custom_call.1} parent=1 // pred_fallthru
      _
    // Predicated region
    $region30: #{tpu_custom_call.1} parent=1 // pred_check
      _
    $region31: #{tpu_custom_call.1} parent=1 // pred_check_branch
      %79 = sbr.rel (0) target = $region33
    $region32: #{tpu_custom_call.1} parent=1 // pred_region
      %s81 = ssub.s32 1024, 1024
      %82 = vsyncadd [#allocation12], %s81
      %s83 = sshll.u32 [#allocation11], 4
      %s84 = int_to_ptr.vmem [resolvable:$true] %s83
      %89 = dma.hbm_to_vmem [thread:$0]  %s7, 1024, %s84, [#allocation12], 64, 64, 4
    $region33: #{tpu_custom_call.1} parent=1 // pred_fallthru
      _
    // Predicated region
    $region34: #{tpu_custom_call.1} parent=1 // pred_check
      _
    $region35: #{tpu_custom_call.1} parent=1 // pred_check_branch
      %91 = sbr.rel (0) target = $region37
    $region36: #{tpu_custom_call.1} parent=1 // pred_region
      %92 = dma.done [#allocation3], 128
    $region37: #{tpu_custom_call.1} parent=1 // pred_fallthru
      _
    // Predicated region
    $region38: #{tpu_custom_call.1} parent=1 // pred_check
      _
    $region39: #{tpu_custom_call.1} parent=1 // pred_check_branch
      %94 = sbr.rel (0) target = $region41
    $region40: #{tpu_custom_call.1} parent=1 // pred_region
      %95 = dma.done [#allocation6], 2048
    $region41: #{tpu_custom_call.1} parent=1 // pred_fallthru
      _
    // Predicated region
    $region42: #{tpu_custom_call.1} parent=1 // pred_check
      _
    $region43: #{tpu_custom_call.1} parent=1 // pred_check_branch
      %97 = sbr.rel (0) target = $region45
    $region44: #{tpu_custom_call.1} parent=1 // pred_region
      %98 = dma.done [#allocation6], 128
    $region45: #{tpu_custom_call.1} parent=1 // pred_fallthru
      _
    // Predicated region
    $region46: #{tpu_custom_call.1} parent=1 // pred_check
      _
    $region47: #{tpu_custom_call.1} parent=1 // pred_check_branch
      %100 = sbr.rel (0) target = $region49
    $region48: #{tpu_custom_call.1} parent=1 // pred_region
      %101 = dma.done [#allocation9], 2048
    $region49: #{tpu_custom_call.1} parent=1 // pred_fallthru
      _
    // Predicated region
    $region50: #{tpu_custom_call.1} parent=1 // pred_check
      _
    $region51: #{tpu_custom_call.1} parent=1 // pred_check_branch
      %103 = sbr.rel (0) target = $region53
    $region52: #{tpu_custom_call.1} parent=1 // pred_region
      %104 = dma.done [#allocation9], 2048
    $region53: #{tpu_custom_call.1} parent=1 // pred_fallthru
      _
    // Predicated region
    $region54: #{tpu_custom_call.1} parent=1 // pred_check
      _
    $region55: #{tpu_custom_call.1} parent=1 // pred_check_branch
      %106 = sbr.rel (0) target = $region57
    $region56: #{tpu_custom_call.1} parent=1 // pred_region
      %107 = dma.done [#allocation12], 1024
    $region57: #{tpu_custom_call.1} parent=1 // pred_fallthru
      _
    %v108 = vld [vmem:[#allocation2] sm:$0xff]
    %v109 = vld [vmem:[#allocation5] sm:$0xff]
    %v110 = vld [vmem:[#allocation5 + $0x8] sm:$0xff]
    %v111 = vld [vmem:[#allocation5 + $0x10] sm:$0xff]
    %v112 = vld [vmem:[#allocation5 + $0x18] sm:$0xff]
    %v113 = vld [vmem:[#allocation5 + $0x20] sm:$0xff]
    %v114 = vld [vmem:[#allocation5 + $0x28] sm:$0xff]
    %v115 = vld [vmem:[#allocation5 + $0x30] sm:$0xff]
    %v116 = vld [vmem:[#allocation5 + $0x38] sm:$0xff]
    %v117 = vld [vmem:[#allocation5 + $0x40] sm:$0xff]
    %v118 = vld [vmem:[#allocation5 + $0x48] sm:$0xff]
    %v119 = vld [vmem:[#allocation5 + $0x50] sm:$0xff]
    %v120 = vld [vmem:[#allocation5 + $0x58] sm:$0xff]
    %v121 = vld [vmem:[#allocation5 + $0x60] sm:$0xff]
    %v122 = vld [vmem:[#allocation5 + $0x68] sm:$0xff]
    %v123 = vld [vmem:[#allocation5 + $0x70] sm:$0xff]
    %v124 = vld [vmem:[#allocation5 + $0x78] sm:$0xff]
    %v125 = vld [vmem:[#allocation7] sm:$0xff]
    %v126 = vunpack.c.l.bf16 %v109
    %v127 = vunpack.c.h.bf16 %v109
    %v128 = vunpack.c.l.bf16 %v110
    %v129 = vunpack.c.h.bf16 %v110
    %v130 = vunpack.c.l.bf16 %v111
    %v131 = vunpack.c.h.bf16 %v111
    %v132 = vunpack.c.l.bf16 %v112
    %v133 = vunpack.c.h.bf16 %v112
    %v134 = vunpack.c.l.bf16 %v113
    %v135 = vunpack.c.h.bf16 %v113
    %v136 = vunpack.c.l.bf16 %v114
    %v137 = vunpack.c.h.bf16 %v114
    %v138 = vunpack.c.l.bf16 %v115
    %v139 = vunpack.c.h.bf16 %v115
    %v140 = vunpack.c.l.bf16 %v116
    %v141 = vunpack.c.h.bf16 %v116
    %v142 = vunpack.c.l.bf16 %v117
    %v143 = vunpack.c.h.bf16 %v117
    %v144 = vunpack.c.l.bf16 %v118
    %v145 = vunpack.c.h.bf16 %v118
    %v146 = vunpack.c.l.bf16 %v119
    %v147 = vunpack.c.h.bf16 %v119
    %v148 = vunpack.c.l.bf16 %v120
    %v149 = vunpack.c.h.bf16 %v120
    %v150 = vunpack.c.l.bf16 %v121
    %v151 = vunpack.c.h.bf16 %v121
    %v152 = vunpack.c.l.bf16 %v122
    %v153 = vunpack.c.h.bf16 %v122
    %v154 = vunpack.c.l.bf16 %v123
    %v155 = vunpack.c.h.bf16 %v123
    %v156 = vunpack.c.l.bf16 %v124
    %v157 = vunpack.c.h.bf16 %v124
    %158 = vmatprep.subr.mxu0 %v127
    %159 = vmatpush1.msra.mxu0 %v126
    %160 = vmatprep.subr.mxu0 %v129
    %161 = vmatpush1.msra.mxu0 %v128
    %162 = vmatprep.subr.mxu0 %v131
    %163 = vmatpush1.msra.mxu0 %v130
    %164 = vmatprep.subr.mxu0 %v133
    %165 = vmatpush1.msra.mxu0 %v132
    %166 = vmatprep.subr.mxu0 %v135
    %167 = vmatpush1.msra.mxu0 %v134
    %168 = vmatprep.subr.mxu0 %v137
    %169 = vmatpush1.msra.mxu0 %v136
    %170 = vmatprep.subr.mxu0 %v139
    %171 = vmatpush1.msra.mxu0 %v138
    %172 = vmatprep.subr.mxu0 %v141
    %173 = vmatpush1.msra.mxu0 %v140
    %174 = vmatprep.subr.mxu0 %v143
    %175 = vmatpush1.msra.mxu0 %v142
    %176 = vmatprep.subr.mxu0 %v145
    %177 = vmatpush1.msra.mxu0 %v144
    %178 = vmatprep.subr.mxu0 %v147
    %179 = vmatpush1.msra.mxu0 %v146
    %180 = vmatprep.subr.mxu0 %v149
    %181 = vmatpush1.msra.mxu0 %v148
    %182 = vmatprep.subr.mxu0 %v151
    %183 = vmatpush1.msra.mxu0 %v150
    %184 = vmatprep.subr.mxu0 %v153
    %185 = vmatpush1.msra.mxu0 %v152
    %186 = vmatprep.subr.mxu0 %v155
    %187 = vmatpush1.msra.mxu0 %v154
    %188 = vmatprep.subr.mxu0 %v157
    %189 = vmatpush1.msra.mxu0 %v156
    %190 = vmatprep.subr.mxu0 0.0
    %191 = vmatpush1.msra.mxu0 0.0
    %192 = vmatprep.subr.mxu0 0.0
    %193 = vmatpush1.msra.mxu0 0.0
    %194 = vmatprep.subr.mxu0 0.0
    %195 = vmatpush1.msra.mxu0 0.0
    %196 = vmatprep.subr.mxu0 0.0
    %197 = vmatpush1.msra.mxu0 0.0
    %198 = vmatprep.subr.mxu0 0.0
    %199 = vmatpush1.msra.mxu0 0.0
    %200 = vmatprep.subr.mxu0 0.0
    %201 = vmatpush1.msra.mxu0 0.0
    %202 = vmatprep.subr.mxu0 0.0
    %203 = vmatpush1.msra.mxu0 0.0
    %204 = vmatprep.subr.mxu0 0.0
    %205 = vmatpush1.msra.mxu0 0.0
    %206 = vmatprep.subr.mxu0 0.0
    %207 = vmatpush1.msra.mxu0 0.0
    %208 = vmatprep.subr.mxu0 0.0
    %209 = vmatpush1.msra.mxu0 0.0
    %210 = vmatprep.subr.mxu0 0.0
    %211 = vmatpush1.msra.mxu0 0.0
    %212 = vmatprep.subr.mxu0 0.0
    %213 = vmatpush1.msra.mxu0 0.0
    %214 = vmatprep.subr.mxu0 0.0
    %215 = vmatpush1.msra.mxu0 0.0
    %216 = vmatprep.subr.mxu0 0.0
    %217 = vmatpush1.msra.mxu0 0.0
    %218 = vmatprep.subr.mxu0 0.0
    %219 = vmatpush1.msra.mxu0 0.0
    %220 = vmatprep.subr.mxu0 0.0
    %221 = vmatpush1.msra.mxu0 0.0
    %222 = vmatprep.mubr.f32.mxu0 0.0
    %223 = vmatmul.mubr.f32.gmra.mrb[0].mxu0 %v108
    %v224 = vpop.f32.mrb[0].mxu0
    %v225 = vadd.f32 0.0, %v224
    %v226 = vpop.f32.mrb[0].mxu0
    %v227 = vadd.f32 0.0, %v226
    %228 = vdwg.mxu0
    %v229 = vlaneseq
    %v230 = vshrl.u32 %v229, 7
    %v231 = vsub.s32 2, %v230
    %v232 = vrot.slane %v125, %v231
    %v233 = vmul.f32 %v232, %v227
    %v234 = vlaneseq
    %v235 = vshrl.u32 %v234, 7
    %v236 = vsub.s32 0, %v235
    %v237 = vrot.slane %v125, %v236
    %v238 = vadd.f32 %v237, %v233
    %v239 = vlaneseq
    %v240 = vshrl.u32 %v239, 7
    %v241 = vsub.s32 3, %v240
    %v242 = vrot.slane %v125, %v241
    %v243 = vmul.f32 %v242, %v227
    %v244 = vlaneseq
    %v245 = vshrl.u32 %v244, 7
    %v246 = vsub.s32 1, %v245
    %v247 = vrot.slane %v125, %v246
    %v248 = vadd.f32 %v247, %v243
    %v249 = vmul.f32 %v225, %v248
    %v250 = vadd.f32 %v238, %v249
    %v251 = vld [vmem:[#allocation8] sm:$0xff]
    %v252 = vld [vmem:[#allocation8 + $0x8] sm:$0xff]
    %v253 = vld [vmem:[#allocation8 + $0x10] sm:$0xff]
    %v254 = vld [vmem:[#allocation8 + $0x18] sm:$0xff]
    %v255 = vld [vmem:[#allocation8 + $0x20] sm:$0xff]
    %v256 = vld [vmem:[#allocation8 + $0x28] sm:$0xff]
    %v257 = vld [vmem:[#allocation8 + $0x30] sm:$0xff]
    %v258 = vld [vmem:[#allocation8 + $0x38] sm:$0xff]
    %v259 = vld [vmem:[#allocation8 + $0x40] sm:$0xff]
    %v260 = vld [vmem:[#allocation8 + $0x48] sm:$0xff]
    %v261 = vld [vmem:[#allocation8 + $0x50] sm:$0xff]
    %v262 = vld [vmem:[#allocation8 + $0x58] sm:$0xff]
    %v263 = vld [vmem:[#allocation8 + $0x60] sm:$0xff]
    %v264 = vld [vmem:[#allocation8 + $0x68] sm:$0xff]
    %v265 = vld [vmem:[#allocation8 + $0x70] sm:$0xff]
    %v266 = vld [vmem:[#allocation8 + $0x78] sm:$0xff]
    %v267 = vld [vmem:[%s4] sm:$0xff]
    %v268 = vunpack.c.l.bf16 %v251
    %v269 = vunpack.c.h.bf16 %v251
    %v270 = vunpack.c.l.bf16 %v252
    %v271 = vunpack.c.h.bf16 %v252
    %v272 = vunpack.c.l.bf16 %v253
    %v273 = vunpack.c.h.bf16 %v253
    %v274 = vunpack.c.l.bf16 %v254
    %v275 = vunpack.c.h.bf16 %v254
    %v276 = vunpack.c.l.bf16 %v255
    %v277 = vunpack.c.h.bf16 %v255
    %v278 = vunpack.c.l.bf16 %v256
    %v279 = vunpack.c.h.bf16 %v256
    %v280 = vunpack.c.l.bf16 %v257
    %v281 = vunpack.c.h.bf16 %v257
    %v282 = vunpack.c.l.bf16 %v258
    %v283 = vunpack.c.h.bf16 %v258
    %v284 = vunpack.c.l.bf16 %v259
    %v285 = vunpack.c.h.bf16 %v259
    %v286 = vunpack.c.l.bf16 %v260
    %v287 = vunpack.c.h.bf16 %v260
    %v288 = vunpack.c.l.bf16 %v261
    %v289 = vunpack.c.h.bf16 %v261
    %v290 = vunpack.c.l.bf16 %v262
    %v291 = vunpack.c.h.bf16 %v262
    %v292 = vunpack.c.l.bf16 %v263
    %v293 = vunpack.c.h.bf16 %v263
    %v294 = vunpack.c.l.bf16 %v264
    %v295 = vunpack.c.h.bf16 %v264
    %v296 = vunpack.c.l.bf16 %v265
    %v297 = vunpack.c.h.bf16 %v265
    %v298 = vunpack.c.l.bf16 %v266
    %v299 = vunpack.c.h.bf16 %v266
    %300 = vmatprep.subr.mxu0 %v269
    %301 = vmatpush1.msra.mxu0 %v268
    %302 = vmatprep.subr.mxu0 %v271
    %303 = vmatpush1.msra.mxu0 %v270
    %304 = vmatprep.subr.mxu0 %v273
    %305 = vmatpush1.msra.mxu0 %v272
    %306 = vmatprep.subr.mxu0 %v275
    %307 = vmatpush1.msra.mxu0 %v274
    %308 = vmatprep.subr.mxu0 %v277
    %309 = vmatpush1.msra.mxu0 %v276
    %310 = vmatprep.subr.mxu0 %v279
    %311 = vmatpush1.msra.mxu0 %v278
    %312 = vmatprep.subr.mxu0 %v281
    %313 = vmatpush1.msra.mxu0 %v280
    %314 = vmatprep.subr.mxu0 %v283
    %315 = vmatpush1.msra.mxu0 %v282
    %316 = vmatprep.subr.mxu0 %v285
    %317 = vmatpush1.msra.mxu0 %v284
    %318 = vmatprep.subr.mxu0 %v287
    %319 = vmatpush1.msra.mxu0 %v286
    %320 = vmatprep.subr.mxu0 %v289
    %321 = vmatpush1.msra.mxu0 %v288
    %322 = vmatprep.subr.mxu0 %v291
    %323 = vmatpush1.msra.mxu0 %v290
    %324 = vmatprep.subr.mxu0 %v293
    %325 = vmatpush1.msra.mxu0 %v292
    %326 = vmatprep.subr.mxu0 %v295
    %327 = vmatpush1.msra.mxu0 %v294
    %328 = vmatprep.subr.mxu0 %v297
    %329 = vmatpush1.msra.mxu0 %v296
    %330 = vmatprep.subr.mxu0 %v299
    %331 = vmatpush1.msra.mxu0 %v298
    %332 = vmatprep.subr.mxu0 0.0
    %333 = vmatpush1.msra.mxu0 0.0
    %334 = vmatprep.subr.mxu0 0.0
    %335 = vmatpush1.msra.mxu0 0.0
    %336 = vmatprep.subr.mxu0 0.0
    %337 = vmatpush1.msra.mxu0 0.0
    %338 = vmatprep.subr.mxu0 0.0
    %339 = vmatpush1.msra.mxu0 0.0
    %340 = vmatprep.subr.mxu0 0.0
    %341 = vmatpush1.msra.mxu0 0.0
    %342 = vmatprep.subr.mxu0 0.0
    %343 = vmatpush1.msra.mxu0 0.0
    %344 = vmatprep.subr.mxu0 0.0
    %345 = vmatpush1.msra.mxu0 0.0
    %346 = vmatprep.subr.mxu0 0.0
    %347 = vmatpush1.msra.mxu0 0.0
    %348 = vmatprep.subr.mxu0 0.0
    %349 = vmatpush1.msra.mxu0 0.0
    %350 = vmatprep.subr.mxu0 0.0
    %351 = vmatpush1.msra.mxu0 0.0
    %352 = vmatprep.subr.mxu0 0.0
    %353 = vmatpush1.msra.mxu0 0.0
    %354 = vmatprep.subr.mxu0 0.0
    %355 = vmatpush1.msra.mxu0 0.0
    %356 = vmatprep.subr.mxu0 0.0
    %357 = vmatpush1.msra.mxu0 0.0
    %358 = vmatprep.subr.mxu0 0.0
    %359 = vmatpush1.msra.mxu0 0.0
    %360 = vmatprep.subr.mxu0 0.0
    %361 = vmatpush1.msra.mxu0 0.0
    %362 = vmatprep.subr.mxu0 0.0
    %363 = vmatpush1.msra.mxu0 0.0
    %364 = vmatprep.mubr.f32.mxu0 0.0
    %365 = vmatmul.mubr.f32.gmra.mrb[0].mxu0 %v250
    %v366 = vpop.f32.mrb[0].mxu0
    %v367 = vadd.f32 0.0, %v366
    %v368 = vpop.f32.mrb[0].mxu0
    %v369 = vadd.f32 0.0, %v368
    %370 = vdwg.mxu0
    %v371 = vlaneseq
    %v372 = vshrl.u32 %v371, 7
    %v373 = vsub.s32 2, %v372
    %v374 = vrot.slane %v267, %v373
    %v375 = vmul.f32 %v374, %v369
    %v376 = vlaneseq
    %v377 = vshrl.u32 %v376, 7
    %v378 = vsub.s32 0, %v377
    %v379 = vrot.slane %v267, %v378
    %v380 = vadd.f32 %v379, %v375
    %v381 = vlaneseq
    %v382 = vshrl.u32 %v381, 7
    %v383 = vsub.s32 3, %v382
    %v384 = vrot.slane %v267, %v383
    %v385 = vmul.f32 %v384, %v369
    %v386 = vlaneseq
    %v387 = vshrl.u32 %v386, 7
    %v388 = vsub.s32 1, %v387
    %v389 = vrot.slane %v267, %v388
    %v390 = vadd.f32 %v389, %v385
    %v391 = vmul.f32 %v367, %v390
    %v392 = vadd.f32 %v380, %v391
    %v393 = vld [vmem:[#allocation10] sm:$0xff]
    %v394 = vld [vmem:[#allocation10 + $0x8] sm:$0xff]
    %v395 = vld [vmem:[#allocation10 + $0x10] sm:$0xff]
    %v396 = vld [vmem:[#allocation10 + $0x18] sm:$0xff]
    %v397 = vld [vmem:[#allocation10 + $0x20] sm:$0xff]
    %v398 = vld [vmem:[#allocation10 + $0x28] sm:$0xff]
    %v399 = vld [vmem:[#allocation10 + $0x30] sm:$0xff]
    %v400 = vld [vmem:[#allocation10 + $0x38] sm:$0xff]
    %v401 = vld [vmem:[#allocation10 + $0x40] sm:$0xff]
    %v402 = vld [vmem:[#allocation10 + $0x48] sm:$0xff]
    %v403 = vld [vmem:[#allocation10 + $0x50] sm:$0xff]
    %v404 = vld [vmem:[#allocation10 + $0x58] sm:$0xff]
    %v405 = vld [vmem:[#allocation10 + $0x60] sm:$0xff]
    %v406 = vld [vmem:[#allocation10 + $0x68] sm:$0xff]
    %v407 = vld [vmem:[#allocation10 + $0x70] sm:$0xff]
    %v408 = vld [vmem:[#allocation10 + $0x78] sm:$0xff]
    %v409 = vld [vmem:[%s6] sm:$0xff]
    %v410 = vunpack.c.l.bf16 %v393
    %v411 = vunpack.c.h.bf16 %v393
    %v412 = vunpack.c.l.bf16 %v394
    %v413 = vunpack.c.h.bf16 %v394
    %v414 = vunpack.c.l.bf16 %v395
    %v415 = vunpack.c.h.bf16 %v395
    %v416 = vunpack.c.l.bf16 %v396
    %v417 = vunpack.c.h.bf16 %v396
    %v418 = vunpack.c.l.bf16 %v397
    %v419 = vunpack.c.h.bf16 %v397
    %v420 = vunpack.c.l.bf16 %v398
    %v421 = vunpack.c.h.bf16 %v398
    %v422 = vunpack.c.l.bf16 %v399
    %v423 = vunpack.c.h.bf16 %v399
    %v424 = vunpack.c.l.bf16 %v400
    %v425 = vunpack.c.h.bf16 %v400
    %v426 = vunpack.c.l.bf16 %v401
    %v427 = vunpack.c.h.bf16 %v401
    %v428 = vunpack.c.l.bf16 %v402
    %v429 = vunpack.c.h.bf16 %v402
    %v430 = vunpack.c.l.bf16 %v403
    %v431 = vunpack.c.h.bf16 %v403
    %v432 = vunpack.c.l.bf16 %v404
    %v433 = vunpack.c.h.bf16 %v404
    %v434 = vunpack.c.l.bf16 %v405
    %v435 = vunpack.c.h.bf16 %v405
    %v436 = vunpack.c.l.bf16 %v406
    %v437 = vunpack.c.h.bf16 %v406
    %v438 = vunpack.c.l.bf16 %v407
    %v439 = vunpack.c.h.bf16 %v407
    %v440 = vunpack.c.l.bf16 %v408
    %v441 = vunpack.c.h.bf16 %v408
    %442 = vmatprep.subr.mxu0 %v411
    %443 = vmatpush1.msra.mxu0 %v410
    %444 = vmatprep.subr.mxu0 %v413
    %445 = vmatpush1.msra.mxu0 %v412
    %446 = vmatprep.subr.mxu0 %v415
    %447 = vmatpush1.msra.mxu0 %v414
    %448 = vmatprep.subr.mxu0 %v417
    %449 = vmatpush1.msra.mxu0 %v416
    %450 = vmatprep.subr.mxu0 %v419
    %451 = vmatpush1.msra.mxu0 %v418
    %452 = vmatprep.subr.mxu0 %v421
    %453 = vmatpush1.msra.mxu0 %v420
    %454 = vmatprep.subr.mxu0 %v423
    %455 = vmatpush1.msra.mxu0 %v422
    %456 = vmatprep.subr.mxu0 %v425
    %457 = vmatpush1.msra.mxu0 %v424
    %458 = vmatprep.subr.mxu0 %v427
    %459 = vmatpush1.msra.mxu0 %v426
    %460 = vmatprep.subr.mxu0 %v429
    %461 = vmatpush1.msra.mxu0 %v428
    %462 = vmatprep.subr.mxu0 %v431
    %463 = vmatpush1.msra.mxu0 %v430
    %464 = vmatprep.subr.mxu0 %v433
    %465 = vmatpush1.msra.mxu0 %v432
    %466 = vmatprep.subr.mxu0 %v435
    %467 = vmatpush1.msra.mxu0 %v434
    %468 = vmatprep.subr.mxu0 %v437
    %469 = vmatpush1.msra.mxu0 %v436
    %470 = vmatprep.subr.mxu0 %v439
    %471 = vmatpush1.msra.mxu0 %v438
    %472 = vmatprep.subr.mxu0 %v441
    %473 = vmatpush1.msra.mxu0 %v440
    %474 = vmatprep.subr.mxu0 0.0
    %475 = vmatpush1.msra.mxu0 0.0
    %476 = vmatprep.subr.mxu0 0.0
    %477 = vmatpush1.msra.mxu0 0.0
    %478 = vmatprep.subr.mxu0 0.0
    %479 = vmatpush1.msra.mxu0 0.0
    %480 = vmatprep.subr.mxu0 0.0
    %481 = vmatpush1.msra.mxu0 0.0
    %482 = vmatprep.subr.mxu0 0.0
    %483 = vmatpush1.msra.mxu0 0.0
    %484 = vmatprep.subr.mxu0 0.0
    %485 = vmatpush1.msra.mxu0 0.0
    %486 = vmatprep.subr.mxu0 0.0
    %487 = vmatpush1.msra.mxu0 0.0
    %488 = vmatprep.subr.mxu0 0.0
    %489 = vmatpush1.msra.mxu0 0.0
    %490 = vmatprep.subr.mxu0 0.0
    %491 = vmatpush1.msra.mxu0 0.0
    %492 = vmatprep.subr.mxu0 0.0
    %493 = vmatpush1.msra.mxu0 0.0
    %494 = vmatprep.subr.mxu0 0.0
    %495 = vmatpush1.msra.mxu0 0.0
    %496 = vmatprep.subr.mxu0 0.0
    %497 = vmatpush1.msra.mxu0 0.0
    %498 = vmatprep.subr.mxu0 0.0
    %499 = vmatpush1.msra.mxu0 0.0
    %500 = vmatprep.subr.mxu0 0.0
    %501 = vmatpush1.msra.mxu0 0.0
    %502 = vmatprep.subr.mxu0 0.0
    %503 = vmatpush1.msra.mxu0 0.0
    %504 = vmatprep.subr.mxu0 0.0
    %505 = vmatpush1.msra.mxu0 0.0
    %506 = vmatprep.mubr.f32.mxu0 0.0
    %507 = vmatmul.mubr.f32.gmra.mrb[0].mxu0 %v392
    %v508 = vpop.f32.mrb[0].mxu0
    %v509 = vadd.f32 0.0, %v508
    %v510 = vpop.f32.mrb[0].mxu0
    %v511 = vadd.f32 0.0, %v510
    %512 = vdwg.mxu0
    %v513 = vlaneseq
    %v514 = vshrl.u32 %v513, 7
    %v515 = vsub.s32 2, %v514
    %v516 = vrot.slane %v409, %v515
    %v517 = vmul.f32 %v516, %v511
    %v518 = vlaneseq
    %v519 = vshrl.u32 %v518, 7
    %v520 = vsub.s32 0, %v519
    %v521 = vrot.slane %v409, %v520
    %v522 = vadd.f32 %v521, %v517
    %v523 = vlaneseq
    %v524 = vshrl.u32 %v523, 7
    %v525 = vsub.s32 3, %v524
    %v526 = vrot.slane %v409, %v525
    %v527 = vmul.f32 %v526, %v511
    %v528 = vlaneseq
    %v529 = vshrl.u32 %v528, 7
    %v530 = vsub.s32 1, %v529
    %v531 = vrot.slane %v409, %v530
    %v532 = vadd.f32 %v531, %v527
    %v533 = vmul.f32 %v509, %v532
    %v534 = vadd.f32 %v522, %v533
    %v535 = vld [vmem:[#allocation11] sm:$0xf]
    %v536 = vld [vmem:[#allocation11 + $0x4] sm:$0xf]
    %v537 = vld [vmem:[#allocation11 + $0x8] sm:$0xf]
    %v538 = vld [vmem:[#allocation11 + $0xc] sm:$0xf]
    %v539 = vld [vmem:[#allocation11 + $0x10] sm:$0xf]
    %v540 = vld [vmem:[#allocation11 + $0x14] sm:$0xf]
    %v541 = vld [vmem:[#allocation11 + $0x18] sm:$0xf]
    %v542 = vld [vmem:[#allocation11 + $0x1c] sm:$0xf]
    %v543 = vld [vmem:[#allocation11 + $0x20] sm:$0xf]
    %v544 = vld [vmem:[#allocation11 + $0x24] sm:$0xf]
    %v545 = vld [vmem:[#allocation11 + $0x28] sm:$0xf]
    %v546 = vld [vmem:[#allocation11 + $0x2c] sm:$0xf]
    %v547 = vld [vmem:[#allocation11 + $0x30] sm:$0xf]
    %v548 = vld [vmem:[#allocation11 + $0x34] sm:$0xf]
    %v549 = vld [vmem:[#allocation11 + $0x38] sm:$0xf]
    %v550 = vld [vmem:[#allocation11 + $0x3c] sm:$0xf]
    %v551 = vunpack.c.l.bf16 %v535
    %v552 = vunpack.c.l.bf16 %v536
    %v553 = vunpack.c.l.bf16 %v537
    %v554 = vunpack.c.l.bf16 %v538
    %v555 = vunpack.c.l.bf16 %v539
    %v556 = vunpack.c.l.bf16 %v540
    %v557 = vunpack.c.l.bf16 %v541
    %v558 = vunpack.c.l.bf16 %v542
    %v559 = vunpack.c.l.bf16 %v543
    %v560 = vunpack.c.l.bf16 %v544
    %v561 = vunpack.c.l.bf16 %v545
    %v562 = vunpack.c.l.bf16 %v546
    %v563 = vunpack.c.l.bf16 %v547
    %v564 = vunpack.c.l.bf16 %v548
    %v565 = vunpack.c.l.bf16 %v549
    %v566 = vunpack.c.l.bf16 %v550
    %567 = vmatprep.subr.mxu0 0.0
    %568 = vmatpush1.msra.mxu0 %v551
    %569 = vmatprep.subr.mxu0 0.0
    %570 = vmatpush1.msra.mxu0 %v552
    %571 = vmatprep.subr.mxu0 0.0
    %572 = vmatpush1.msra.mxu0 %v553
    %573 = vmatprep.subr.mxu0 0.0
    %574 = vmatpush1.msra.mxu0 %v554
    %575 = vmatprep.subr.mxu0 0.0
    %576 = vmatpush1.msra.mxu0 %v555
    %577 = vmatprep.subr.mxu0 0.0
    %578 = vmatpush1.msra.mxu0 %v556
    %579 = vmatprep.subr.mxu0 0.0
    %580 = vmatpush1.msra.mxu0 %v557
    %581 = vmatprep.subr.mxu0 0.0
    %582 = vmatpush1.msra.mxu0 %v558
    %583 = vmatprep.subr.mxu0 0.0
    %584 = vmatpush1.msra.mxu0 %v559
    %585 = vmatprep.subr.mxu0 0.0
    %586 = vmatpush1.msra.mxu0 %v560
    %587 = vmatprep.subr.mxu0 0.0
    %588 = vmatpush1.msra.mxu0 %v561
    %589 = vmatprep.subr.mxu0 0.0
    %590 = vmatpush1.msra.mxu0 %v562
    %591 = vmatprep.subr.mxu0 0.0
    %592 = vmatpush1.msra.mxu0 %v563
    %593 = vmatprep.subr.mxu0 0.0
    %594 = vmatpush1.msra.mxu0 %v564
    %595 = vmatprep.subr.mxu0 0.0
    %596 = vmatpush1.msra.mxu0 %v565
    %597 = vmatprep.subr.mxu0 0.0
    %598 = vmatpush1.msra.mxu0 %v566
    %599 = vmatprep.subr.mxu0 0.0
    %600 = vmatpush1.msra.mxu0 0.0
    %601 = vmatprep.subr.mxu0 0.0
    %602 = vmatpush1.msra.mxu0 0.0
    %603 = vmatprep.subr.mxu0 0.0
    %604 = vmatpush1.msra.mxu0 0.0
    %605 = vmatprep.subr.mxu0 0.0
    %606 = vmatpush1.msra.mxu0 0.0
    %607 = vmatprep.subr.mxu0 0.0
    %608 = vmatpush1.msra.mxu0 0.0
    %609 = vmatprep.subr.mxu0 0.0
    %610 = vmatpush1.msra.mxu0 0.0
    %611 = vmatprep.subr.mxu0 0.0
    %612 = vmatpush1.msra.mxu0 0.0
    %613 = vmatprep.subr.mxu0 0.0
    %614 = vmatpush1.msra.mxu0 0.0
    %615 = vmatprep.subr.mxu0 0.0
    %616 = vmatpush1.msra.mxu0 0.0
    %617 = vmatprep.subr.mxu0 0.0
    %618 = vmatpush1.msra.mxu0 0.0
    %619 = vmatprep.subr.mxu0 0.0
    %620 = vmatpush1.msra.mxu0 0.0
    %621 = vmatprep.subr.mxu0 0.0
    %622 = vmatpush1.msra.mxu0 0.0
    %623 = vmatprep.subr.mxu0 0.0
    %624 = vmatpush1.msra.mxu0 0.0
    %625 = vmatprep.subr.mxu0 0.0
    %626 = vmatpush1.msra.mxu0 0.0
    %627 = vmatprep.subr.mxu0 0.0
    %628 = vmatpush1.msra.mxu0 0.0
    %629 = vmatprep.subr.mxu0 0.0
    %630 = vmatpush1.msra.mxu0 0.0
    %631 = vmatprep.mubr.f32.mxu0 0.0
    %632 = vmatmul.mubr.f32.gmra.mrb[0].mxu0 %v534
    %v633 = vpop.f32.mrb[0].mxu0
    %v634 = vadd.f32 0.0, %v633
    %v635 = vpop.f32.mrb[0].mxu0
    %636 = vdwg.mxu0
    %v637 = vmul.f32 %v634, 0.033333335
    %638 = vst [vmem:[#allocation13] sm:$0xff] %v637
    // Predicated region
    $region58: #{tpu_custom_call.1} parent=1 // pred_check
      _
    $region59: #{tpu_custom_call.1} parent=1 // pred_check_branch
      %640 = sbr.rel (0) target = $region61
    $region60: #{tpu_custom_call.1} parent=1 // pred_region
      %s642 = ssub.s32 128, 128
      %643 = vsyncadd [#allocation4], %s642
      %s645 = sshll.u32 [#allocation13], 4
      %s646 = int_to_ptr.vmem [resolvable:$true] %s645
      %648 = dma.vmem_to_hbm [thread:$0]  %s646, 128, %s8, [#allocation4]
    $region61: #{tpu_custom_call.1} parent=1 // pred_fallthru
      _
    // Predicated region
    $region62: #{tpu_custom_call.1} parent=1 // pred_check
      _
    $region63: #{tpu_custom_call.1} parent=1 // pred_check_branch
      %650 = sbr.rel (0) target = $region65
    $region64: #{tpu_custom_call.1} parent=1 // pred_region
      %651 = dma.done [#allocation4], 128
    $region65: #{tpu_custom_call.1} parent=1 // pred_fallthru
      _
    %652 = vsyncpa [#allocation3], 1
    %653 = vsyncpa [#allocation6], 1
    %654 = vsyncpa [#allocation9], 1
    %655 = vsyncpa [#allocation12], 1
    %656 = vsyncpa [#allocation4], 1

</llo_original>
